<compile_context>
chip_gen: v7x
topology: tpu7x:2x2x1
jax: 0.10.0
libtpu: 0.0.40
codegen_flags: <defaults>
</compile_context>

<pallas_src>
import functools

import jax
import jax.numpy as jnp
from jax.experimental import pallas as pl
from jax.experimental.pallas import tpu as pltpu

VMEM = pltpu.MemorySpace.VMEM

# ---------------------------------------------------------------------------
# Config (small, deterministic, consistent with ChatGLM structure)
# ---------------------------------------------------------------------------
CFG = dict(
    padded_vocab_size=256,
    hidden_size=128,
    num_attention_heads=4,
    multi_query_group_num=2,     # num_kv_heads
    kv_channels=32,              # == head_dim
    ffn_hidden_size=128,
    num_layers=2,
    seq_length=64,
    layernorm_epsilon=1e-5,
    rope_theta=10000.0,
    add_bias_linear=False,
    add_qkv_bias=True,
    apply_residual_connection_post_layernorm=False,
)


# ---------------------------------------------------------------------------
# Fused per-layer kernel (grid over layers; residual carried in f32 scratch)
# ---------------------------------------------------------------------------
def _glm_layer_kernel(hid_ref, cos_ref, sin_ref, fln_ref,
                      iln_ref, qkvw_ref, qkvb_ref, dw_ref, pln_ref,
                      guw_ref, w2_ref,
                      out_ref, res_ref, *, eps, nh, nkv, hd, ffn):
    l = pl.program_id(0)

    @pl.when(l == 0)
    def _():
        res_ref[...] = hid_ref[...].astype(jnp.float32)

    # ---- input RMSNorm (f32 math) -> bf16 for the MXU -------------------
    x = res_ref[...]
    ln = (x * jax.lax.rsqrt(jnp.mean(x * x, axis=-1, keepdims=True) + eps)
          * iln_ref[...]).astype(jnp.bfloat16)

    # ---- QKV projection (+bias); attention scale pre-folded into Q rows --
    qkv = jnp.dot(ln, qkvw_ref[...], preferred_element_type=jnp.float32)
    qkv = qkv + qkvb_ref[...]

    # ---- interleaved RoPE, lane-dense over the full qkv width -----------
    # cos=1 / sin=0 over the V region and past rotary_dim make it a
    # passthrough there; the even/odd pair swap never crosses a head
    # boundary (head_dim and rotary_dim are even -- asserted at init).
    d = qkv.shape[-1]
    nxt = pltpu.roll(qkv, shift=d - 1, axis=1)   # lane i holds x[i+1] (cyclic)
    prv = pltpu.roll(qkv, shift=1, axis=1)       # lane i holds x[i-1]
    lane = jax.lax.broadcasted_iota(jnp.int32, qkv.shape, 1)
    swapped = jnp.where(lane % 2 == 0, nxt, prv)
    roped = qkv * cos_ref[...] + swapped * sin_ref[...]

    q_size = nh * hd
    kv_size = nkv * hd
    rep = nh // nkv
    t = qkv.shape[0]

    # causal mask built ONCE per layer (shared by all heads)
    row = jax.lax.broadcasted_iota(jnp.int32, (t, t), 0)
    col = jax.lax.broadcasted_iota(jnp.int32, (t, t), 1)
    causal = col <= row

    # ---- GQA attention: per-head softmax, lane-dense (T, nh*hd) result ---
    heads = []
    for h in range(nh):
        g = h // rep
        qh = roped[:, h * hd:(h + 1) * hd].astype(jnp.bfloat16)
        kh = roped[:, q_size + g * hd:q_size + (g + 1) * hd].astype(jnp.bfloat16)
        vh = qkv[:, q_size + kv_size + g * hd:
                 q_size + kv_size + (g + 1) * hd].astype(jnp.bfloat16)
        s = jax.lax.dot_general(qh, kh, (((1,), (1,)), ((), ())),
                                preferred_element_type=jnp.float32)
        s = jnp.where(causal, s, -1e30)
        m = jnp.max(s, axis=-1, keepdims=True)
        p = jnp.exp(s - m)
        denom = jnp.sum(p, axis=-1, keepdims=True)
        o = jnp.dot(p.astype(jnp.bfloat16), vh, preferred_element_type=jnp.float32)
        # normalize the (T, hd) output, not the (T, T) probs; recip -> EUP
        heads.append(o * pl.reciprocal(denom, approx=True))
    attn = jnp.concatenate(heads, axis=-1).astype(jnp.bfloat16)   # (T, nh*hd)

    # ---- output projection (contraction = nh*hd = 128) + residual -------
    res_ref[...] = res_ref[...] + jnp.dot(attn, dw_ref[...],
                                          preferred_element_type=jnp.float32)

    # ---- post-attention RMSNorm ------------------------------------------
    x2 = res_ref[...]
    ln2 = (x2 * jax.lax.rsqrt(jnp.mean(x2 * x2, axis=-1, keepdims=True) + eps)
           * pln_ref[...]).astype(jnp.bfloat16)

    # ---- SwiGLU MLP: fused gate+up matmul, lane split, down proj + res ---
    gu = jnp.dot(ln2, guw_ref[...], preferred_element_type=jnp.float32)  # (T, 2F)
    g_ = gu[:, :ffn]
    u_ = gu[:, ffn:]
    act = (g_ * jax.nn.sigmoid(g_) * u_).astype(jnp.bfloat16)
    res_ref[...] = res_ref[...] + jnp.dot(act, w2_ref[...],
                                          preferred_element_type=jnp.float32)

    # ---- final RMSNorm fused into the last layer step --------------------
    @pl.when(l == pl.num_programs(0) - 1)
    def _():
        xf = res_ref[...]
        out_ref[...] = (
            xf * jax.lax.rsqrt(jnp.mean(xf * xf, axis=-1, keepdims=True) + eps)
            * fln_ref[...]).astype(out_ref.dtype)


def glm_forward_pallas(params, hidden, cos_full, sin_full, cfg):
    t, hsz = hidden.shape
    nh = cfg["num_attention_heads"]
    nkv = cfg["multi_query_group_num"]
    hd = hsz // nh
    qkv_out = (nh + 2 * nkv) * hd
    f = cfg["ffn_hidden_size"]
    nl = cfg["num_layers"]

    kernel = functools.partial(_glm_layer_kernel, eps=cfg["layernorm_epsilon"],
                               nh=nh, nkv=nkv, hd=hd, ffn=f)
    return pl.pallas_call(
        kernel,
        out_shape=jax.ShapeDtypeStruct((t, hsz), hidden.dtype),
        grid=(nl,),
        in_specs=[
            pl.BlockSpec((t, hsz), lambda l: (0, 0)),          # hidden (embeds)
            pl.BlockSpec((t, qkv_out), lambda l: (0, 0)),      # cos table
            pl.BlockSpec((t, qkv_out), lambda l: (0, 0)),      # sin table
            pl.BlockSpec((1, hsz), lambda l: (0, 0)),          # final LN weight
            pl.BlockSpec((None, 1, hsz), lambda l: (l, 0, 0)),        # input LN
            pl.BlockSpec((None, hsz, qkv_out), lambda l: (l, 0, 0)),  # qkv W^T
            pl.BlockSpec((None, 1, qkv_out), lambda l: (l, 0, 0)),    # qkv bias
            pl.BlockSpec((None, nh * hd, hsz), lambda l: (l, 0, 0)),  # dense W^T
            pl.BlockSpec((None, 1, hsz), lambda l: (l, 0, 0)),        # post LN
            pl.BlockSpec((None, hsz, 2 * f), lambda l: (l, 0, 0)),    # gate|up W^T
            pl.BlockSpec((None, f, hsz), lambda l: (l, 0, 0)),        # down W^T
        ],
        out_specs=pl.BlockSpec((t, hsz), lambda l: (0, 0)),
        scratch_shapes=[pltpu.VMEM((t, hsz), jnp.float32)],    # f32 residual carry
        compiler_params=pltpu.CompilerParams(
            dimension_semantics=("arbitrary",)),
    )(hidden, cos_full, sin_full, params["final_ln"],
      params["input_ln"], params["qkv_w_t"], params["qkv_b"],
      params["dense_w_t"], params["post_ln"], params["gu_w_t"], params["w2_t"])


# ---------------------------------------------------------------------------
# lm_head (tiny single-block matmul)
# ---------------------------------------------------------------------------
def _lm_head_kernel(x_ref, w_ref, o_ref):
    o_ref[...] = jnp.dot(x_ref[...], w_ref[...],
                         preferred_element_type=jnp.float32).astype(o_ref.dtype)


def lm_head(x, w_t):
    return pl.pallas_call(
        _lm_head_kernel,
        out_shape=jax.ShapeDtypeStruct((x.shape[0], w_t.shape[1]), jnp.float32),
        in_specs=[pl.BlockSpec(memory_space=VMEM),
                  pl.BlockSpec(memory_space=VMEM)],
        out_specs=pl.BlockSpec(memory_space=VMEM),
    )(x, w_t)


# ---------------------------------------------------------------------------
# Rotary tables over the full qkv width (interleaved / non-neox,
# rotary_dim = head_dim // 2; ones/zeros elsewhere -> passthrough).
# ---------------------------------------------------------------------------
def rope_tables(positions, head_dim, nh, nkv, theta):
    rot = head_dim // 2
    inv_freq = 1.0 / (theta ** (jnp.arange(0, rot, 2, dtype=jnp.float32) / rot))
    freqs = positions.astype(jnp.float32)[:, None] * inv_freq[None, :]
    cos = jnp.repeat(jnp.cos(freqs), 2, axis=-1)                       # (T, rot)
    sin = jnp.repeat(jnp.sin(freqs), 2, axis=-1)
    sign = jnp.tile(jnp.array([-1.0, 1.0], jnp.float32), rot // 2)
    t = positions.shape[0]
    cos_h = jnp.concatenate([cos, jnp.ones((t, head_dim - rot), jnp.float32)], -1)
    sin_h = jnp.concatenate([sin * sign,
                             jnp.zeros((t, head_dim - rot), jnp.float32)], -1)
    cos_full = jnp.concatenate(
        [jnp.tile(cos_h, (1, nh)), jnp.tile(cos_h, (1, nkv)),
         jnp.ones((t, nkv * head_dim), jnp.float32)], -1)
    sin_full = jnp.concatenate(
        [jnp.tile(sin_h, (1, nh)), jnp.tile(sin_h, (1, nkv)),
         jnp.zeros((t, nkv * head_dim), jnp.float32)], -1)
    return cos_full, sin_full


# ---------------------------------------------------------------------------
# Parameters (deterministic, synthetic). Pre-transposed, layer-stacked, bf16.
# Attention scaling folded into the Q rows of the QKV weight and bias.
# ---------------------------------------------------------------------------
def init_params(key, cfg):
    h = cfg["hidden_size"]
    v = cfg["padded_vocab_size"]
    nh = cfg["num_attention_heads"]
    nkv = cfg["multi_query_group_num"]
    hd = h // nh
    assert cfg["kv_channels"] == hd
    rot = hd // 2
    assert hd % 2 == 0 and rot % 2 == 0, "RoPE roll trick needs even head/rotary dims"
    q_size = nh * hd
    qkv_out = q_size + 2 * nkv * hd
    f = cfg["ffn_hidden_size"]
    nl = cfg["num_layers"]
    scale = hd ** (-0.5)

    def nrm(k, shape):
        return jax.random.normal(k, shape, jnp.float32) * 0.02

    keys = iter(jax.random.split(key, 2 + 4 * nl))
    emb = nrm(next(keys), (v, h)).astype(jnp.bfloat16)
    lm_w = nrm(next(keys), (v, h))

    in_ln, qkv_w, qkv_b, dense_w, post_ln, gu_w, w2 = ([] for _ in range(7))
    for _ in range(nl):
        qw = nrm(next(keys), (qkv_out, h))               # torch (out, in)
        qw = qw.at[:q_size].multiply(scale)              # fold attn scale into Q
        qb = jnp.full((qkv_out,), 0.01, jnp.float32).at[:q_size].multiply(scale)
        dw = nrm(next(keys), (h, q_size))                # torch (out, in)
        w1 = nrm(next(keys), (2 * f, h))                 # rows: [gate ; up]
        w2_ = nrm(next(keys), (h, f))
        in_ln.append(jnp.ones((1, h), jnp.float32))
        post_ln.append(jnp.ones((1, h), jnp.float32))
        qkv_w.append(jnp.transpose(qw).astype(jnp.bfloat16))     # (h, qkv_out)
        qkv_b.append(qb[None, :])                                # (1, qkv_out) f32
        dense_w.append(jnp.transpose(dw).astype(jnp.bfloat16))   # (q_size, h)
        gu_w.append(jnp.transpose(w1).astype(jnp.bfloat16))      # (h, 2f): [:f]=gate
        w2.append(jnp.transpose(w2_).astype(jnp.bfloat16))       # (f, h)

    return dict(
        embedding=emb,
        lm_head_w_t=jnp.transpose(lm_w).astype(jnp.bfloat16),    # (h, v)
        final_ln=jnp.ones((1, h), jnp.float32),
        input_ln=jnp.stack(in_ln),          # (L, 1, h)
        qkv_w_t=jnp.stack(qkv_w),           # (L, h, qkv_out)
        qkv_b=jnp.stack(qkv_b),             # (L, 1, qkv_out)
        dense_w_t=jnp.stack(dense_w),       # (L, q_size, h)
        post_ln=jnp.stack(post_ln),         # (L, 1, h)
        gu_w_t=jnp.stack(gu_w),             # (L, h, 2f)
        w2_t=jnp.stack(w2),                 # (L, f, h)
    )


# ---------------------------------------------------------------------------
# Model forward (== ChatGLMForCausalLM.forward -> transformer(...))
# ---------------------------------------------------------------------------
def chatglm_forward(params, tokens, positions, cfg):
    h = cfg["hidden_size"]
    nh = cfg["num_attention_heads"]
    nkv = cfg["multi_query_group_num"]
    hd = h // nh

    t = tokens.shape[0]
    t_pad = ((t + 15) // 16) * 16            # bf16 sublane pack (16, 128) tiles
    pad = t_pad - t
    tokens_p = jnp.pad(tokens, (0, pad)) if pad else tokens
    if pad:
        extra = positions[-1] + 1 + jnp.arange(pad, dtype=positions.dtype)
        positions_p = jnp.concatenate([positions, extra])
    else:
        positions_p = positions

    hidden = params["embedding"][tokens_p]   # embedding gather (glue)
    cos_full, sin_full = rope_tables(positions_p, hd, nh, nkv, cfg["rope_theta"])

    out = glm_forward_pallas(params, hidden, cos_full, sin_full, cfg)
    return out[:t]


def compute_logits(params, hidden, query_start_loc):
    idx = query_start_loc - 1
    last = hidden[idx[1:]]                   # last token per sequence
    return lm_head(last, params["lm_head_w_t"])


# ---------------------------------------------------------------------------
if __name__ == "__main__":
    cfg = CFG
    key = jax.random.PRNGKey(0)
    pkey, tkey = jax.random.split(key)
    params = init_params(pkey, cfg)

    seq_len = 8
    tokens = jax.random.randint(tkey, (seq_len,), 0, cfg["padded_vocab_size"],
                                dtype=jnp.int32)
    positions = jnp.arange(seq_len, dtype=jnp.int32)
    query_start_loc = jnp.array([0, seq_len], dtype=jnp.int32)

    hidden = chatglm_forward(params, tokens, positions, cfg)
    logits = compute_logits(params, hidden, query_start_loc)
    jax.block_until_ready((hidden, logits))

    assert hidden.shape == (seq_len, cfg["hidden_size"])
    assert logits.shape == (1, cfg["padded_vocab_size"])
    print("KERNEL_OK")
</pallas_src>

<mosaic_0001>
module attributes {stable_mosaic.version = 11 : i64} {
  func.func @_glm_layer_kernel(%arg0: i32, %arg1: memref<16x128xbf16, #tpu.memory_space<vmem>>, %arg2: memref<16x256xf32, #tpu.memory_space<vmem>>, %arg3: memref<16x256xf32, #tpu.memory_space<vmem>>, %arg4: memref<1x128xf32, #tpu.memory_space<vmem>>, %arg5: memref<1x1x128xf32, #tpu.memory_space<vmem>>, %arg6: memref<1x128x256xbf16, #tpu.memory_space<vmem>>, %arg7: memref<1x1x256xf32, #tpu.memory_space<vmem>>, %arg8: memref<1x128x128xbf16, #tpu.memory_space<vmem>>, %arg9: memref<1x1x128xf32, #tpu.memory_space<vmem>>, %arg10: memref<1x128x256xbf16, #tpu.memory_space<vmem>>, %arg11: memref<1x128x128xbf16, #tpu.memory_space<vmem>>, %arg12: memref<16x128xbf16, #tpu.memory_space<vmem>>, %arg13: memref<16x128xf32, #tpu.memory_space<vmem>>) attributes {dimension_semantics = [#tpu.dimension_semantics<arbitrary>], iteration_bounds = array<i64: 2>, scalar_prefetch = 0 : i64, scratch_operands = 1 : i64, tpu.core_type = #tpu.core_type<tc>, window_params = [{pipeline_mode = #tpu.pipeline_mode<synchronous>, transform_indices = @transform_0, window_bounds = array<i64: 16, 128>}, {pipeline_mode = #tpu.pipeline_mode<synchronous>, transform_indices = @transform_1, window_bounds = array<i64: 16, 256>}, {pipeline_mode = #tpu.pipeline_mode<synchronous>, transform_indices = @transform_2, window_bounds = array<i64: 16, 256>}, {pipeline_mode = #tpu.pipeline_mode<synchronous>, transform_indices = @transform_3, window_bounds = array<i64: 1, 128>}, {transform_indices = @transform_4, window_bounds = array<i64: 1, 1, 128>}, {transform_indices = @transform_5, window_bounds = array<i64: 1, 128, 256>}, {transform_indices = @transform_6, window_bounds = array<i64: 1, 1, 256>}, {transform_indices = @transform_7, window_bounds = array<i64: 1, 128, 128>}, {transform_indices = @transform_8, window_bounds = array<i64: 1, 1, 128>}, {transform_indices = @transform_9, window_bounds = array<i64: 1, 128, 256>}, {transform_indices = @transform_10, window_bounds = array<i64: 1, 128, 128>}, {pipeline_mode = #tpu.pipeline_mode<synchronous>, transform_indices = @transform_11, window_bounds = array<i64: 16, 128>}]} {
    %c0_i32 = arith.constant 0 : i32
    %0 = arith.cmpi eq, %arg0, %c0_i32 : i32
    %1 = arith.extui %0 : i1 to i32
    %c0_i32_0 = arith.constant 0 : i32
    %2 = arith.cmpi ne, %1, %c0_i32_0 : i32
    scf.if %2 {
      %c0_75 = arith.constant 0 : index
      %c0_76 = arith.constant 0 : index
      %186 = vector.load %arg1[%c0_75, %c0_76] : memref<16x128xbf16, #tpu.memory_space<vmem>>, vector<16x128xbf16>
      %187 = arith.extf %186 : vector<16x128xbf16> to vector<16x128xf32>
      %c0_77 = arith.constant 0 : index
      %c0_78 = arith.constant 0 : index
      %188 = vector.load %arg13[%c0_77, %c0_78] : memref<16x128xf32, #tpu.memory_space<vmem>>, vector<16x128xf32>
      tpu.vector_store %arg13[%c0_77, %c0_78], %187 {strides = array<i32>} : memref<16x128xf32, #tpu.memory_space<vmem>>, vector<16x128xf32>,
    } else {
    }
    %c0 = arith.constant 0 : index
    %c0_1 = arith.constant 0 : index
    %3 = vector.load %arg13[%c0, %c0_1] : memref<16x128xf32, #tpu.memory_space<vmem>>, vector<16x128xf32>
    %4 = arith.mulf %3, %3 : vector<16x128xf32>
    %cst = arith.constant dense<0.000000e+00> : vector<16xf32>
    %5 = vector.multi_reduction <add>, %4, %cst [1] : vector<16x128xf32> to vector<16xf32>
    %6 = vector.shape_cast %5 : vector<16xf32> to vector<16x1xf32>
    %cst_2 = arith.constant 1.280000e+02 : f32
    %7 = vector.broadcast %cst_2 : f32 to vector<16x1xf32>
    %8 = arith.divf %6, %7 : vector<16x1xf32>
    %cst_3 = arith.constant 9.99999974E-6 : f32
    %9 = vector.broadcast %cst_3 : f32 to vector<16x1xf32>
    %10 = arith.addf %8, %9 : vector<16x1xf32>
    %11 = math.rsqrt %10 : vector<16x1xf32>
    %12 = vector.broadcast %11 : vector<16x1xf32> to vector<16x128xf32>
    %13 = arith.mulf %3, %12 : vector<16x128xf32>
    %c0_4 = arith.constant 0 : index
    %c0_5 = arith.constant 0 : index
    %c0_6 = arith.constant 0 : index
    %14 = vector.load %arg5[%c0_4, %c0_5, %c0_6] : memref<1x1x128xf32, #tpu.memory_space<vmem>>, vector<1x1x128xf32>
    %15 = vector.shape_cast %14 : vector<1x1x128xf32> to vector<1x128xf32>
    %16 = vector.broadcast %15 : vector<1x128xf32> to vector<16x128xf32>
    %17 = arith.mulf %13, %16 : vector<16x128xf32>
    %18 = arith.truncf %17 : vector<16x128xf32> to vector<16x128xbf16>
    %c0_7 = arith.constant 0 : index
    %c0_8 = arith.constant 0 : index
    %c0_9 = arith.constant 0 : index
    %19 = vector.load %arg6[%c0_7, %c0_8, %c0_9] : memref<1x128x256xbf16, #tpu.memory_space<vmem>>, vector<1x128x256xbf16>
    %20 = vector.shape_cast %19 : vector<1x128x256xbf16> to vector<128x256xbf16>
    %cst_10 = arith.constant dense<0.000000e+00> : vector<16x256xf32>
    %21 = tpu.matmul %18, %20, %cst_10 {dimension_numbers = #tpu.dot_dimension_numbers<[1], [0], [0], [1], [0, 0, 1, 1], [], []>} : vector<16x128xbf16>, vector<128x256xbf16>, vector<16x256xf32> -> vector<16x256xf32>
    %c0_11 = arith.constant 0 : index
    %c0_12 = arith.constant 0 : index
    %c0_13 = arith.constant 0 : index
    %22 = vector.load %arg7[%c0_11, %c0_12, %c0_13] : memref<1x1x256xf32, #tpu.memory_space<vmem>>, vector<1x1x256xf32>
    %23 = vector.shape_cast %22 : vector<1x1x256xf32> to vector<1x256xf32>
    %24 = vector.broadcast %23 : vector<1x256xf32> to vector<16x256xf32>
    %25 = arith.addf %21, %24 : vector<16x256xf32>
    %c255_i32 = arith.constant 255 : i32
    %26 = tpu.dynamic_rotate %25 by %c255_i32 dim 1 : vector<16x256xf32>, i32 -> vector<16x256xf32>
    %c1_i32 = arith.constant 1 : i32
    %27 = tpu.dynamic_rotate %25 by %c1_i32 dim 1 : vector<16x256xf32>, i32 -> vector<16x256xf32>
    %28 = tpu.iota {dimensions = array<i32: 1>} : vector<16x256xi32>
    %c2_i32 = arith.constant 2 : i32
    %c0_i32_14 = arith.constant 0 : i32
    %29 = arith.cmpi eq, %c2_i32, %c0_i32_14 : i32
    %c1_i32_15 = arith.constant 1 : i32
    %30 = arith.select %29, %c1_i32_15, %c2_i32 : i32
    %31 = vector.broadcast %30 : i32 to vector<16x256xi32>
    %32 = arith.remsi %28, %31 : vector<16x256xi32>
    %c0_i32_16 = arith.constant 0 : i32
    %33 = vector.broadcast %c0_i32_16 : i32 to vector<16x256xi32>
    %34 = arith.cmpi ne, %32, %33 : vector<16x256xi32>
    %c0_i32_17 = arith.constant 0 : i32
    %35 = vector.broadcast %c0_i32_17 : i32 to vector<16x256xi32>
    %36 = arith.cmpi slt, %32, %35 : vector<16x256xi32>
    %c0_i32_18 = arith.constant 0 : i32
    %37 = arith.cmpi slt, %30, %c0_i32_18 : i32
    %38 = vector.broadcast %37 : i1 to vector<16x256xi1>
    %39 = vector.broadcast %38 : vector<16x256xi1> to vector<16x256xi1>
    %40 = arith.xori %36, %39 : vector<16x256xi1>
    %41 = arith.andi %40, %34 : vector<16x256xi1>
    %42 = vector.broadcast %30 : i32 to vector<16x256xi32>
    %43 = arith.addi %32, %42 : vector<16x256xi32>
    %44 = arith.select %41, %43, %32 : vector<16x256xi1>, vector<16x256xi32>
    %c0_i32_19 = arith.constant 0 : i32
    %45 = vector.broadcast %c0_i32_19 : i32 to vector<16x256xi32>
    %46 = arith.cmpi eq, %44, %45 : vector<16x256xi32>
    %47 = arith.select %46, %26, %27 : vector<16x256xi1>, vector<16x256xf32>
    %c0_20 = arith.constant 0 : index
    %c0_21 = arith.constant 0 : index
    %48 = vector.load %arg2[%c0_20, %c0_21] : memref<16x256xf32, #tpu.memory_space<vmem>>, vector<16x256xf32>
    %49 = arith.mulf %25, %48 : vector<16x256xf32>
    %c0_22 = arith.constant 0 : index
    %c0_23 = arith.constant 0 : index
    %50 = vector.load %arg3[%c0_22, %c0_23] : memref<16x256xf32, #tpu.memory_space<vmem>>, vector<16x256xf32>
    %51 = arith.mulf %47, %50 : vector<16x256xf32>
    %52 = arith.addf %49, %51 : vector<16x256xf32>
    %53 = tpu.iota {dimensions = array<i32: 0>} : vector<16x16xi32>
    %54 = tpu.iota {dimensions = array<i32: 1>} : vector<16x16xi32>
    %55 = arith.cmpi sle, %54, %53 : vector<16x16xi32>
    %56 = vector.extract_strided_slice %52 {offsets = [0, 0], sizes = [16, 32], strides = [1, 1]} : vector<16x256xf32> to vector<16x32xf32>
    %57 = arith.truncf %56 : vector<16x32xf32> to vector<16x32xbf16>
    %58 = vector.extract_strided_slice %52 {offsets = [0, 128], sizes = [16, 32], strides = [1, 1]} : vector<16x256xf32> to vector<16x32xf32>
    %59 = arith.truncf %58 : vector<16x32xf32> to vector<16x32xbf16>
    %60 = vector.extract_strided_slice %25 {offsets = [0, 192], sizes = [16, 32], strides = [1, 1]} : vector<16x256xf32> to vector<16x32xf32>
    %61 = arith.truncf %60 : vector<16x32xf32> to vector<16x32xbf16>
    %cst_24 = arith.constant dense<0.000000e+00> : vector<16x16xf32>
    %62 = tpu.matmul %57, %59, %cst_24 {dimension_numbers = #tpu.dot_dimension_numbers<[1], [1], [0], [0], [0, 0, 1, 0], [], []>} : vector<16x32xbf16>, vector<16x32xbf16>, vector<16x16xf32> -> vector<16x16xf32>
    %cst_25 = arith.constant -1.000000e+30 : f32
    %63 = vector.broadcast %cst_25 : f32 to vector<16x16xf32>
    %64 = arith.select %55, %62, %63 : vector<16x16xi1>, vector<16x16xf32>
    %cst_26 = arith.constant dense<0xFF800000> : vector<16xf32>
    %65 = vector.multi_reduction <maximumf>, %64, %cst_26 [1] : vector<16x16xf32> to vector<16xf32>
    %66 = vector.shape_cast %65 : vector<16xf32> to vector<16x1xf32>
    %67 = vector.broadcast %66 : vector<16x1xf32> to vector<16x16xf32>
    %68 = arith.subf %64, %67 : vector<16x16xf32>
    %69 = math.exp %68 : vector<16x16xf32>
    %cst_27 = arith.constant dense<0.000000e+00> : vector<16xf32>
    %70 = vector.multi_reduction <add>, %69, %cst_27 [1] : vector<16x16xf32> to vector<16xf32>
    %71 = vector.shape_cast %70 : vector<16xf32> to vector<16x1xf32>
    %72 = arith.truncf %69 : vector<16x16xf32> to vector<16x16xbf16>
    %cst_28 = arith.constant dense<0.000000e+00> : vector<16x32xf32>
    %73 = tpu.matmul %72, %61, %cst_28 {dimension_numbers = #tpu.dot_dimension_numbers<[1], [0], [0], [1], [0, 0, 1, 1], [], []>} : vector<16x16xbf16>, vector<16x32xbf16>, vector<16x32xf32> -> vector<16x32xf32>
    %74 = tpu.reciprocal %71 {approx = true} : vector<16x1xf32> -> vector<16x1xf32>
    %75 = vector.broadcast %74 : vector<16x1xf32> to vector<16x32xf32>
    %76 = arith.mulf %73, %75 : vector<16x32xf32>
    %77 = vector.extract_strided_slice %52 {offsets = [0, 32], sizes = [16, 32], strides = [1, 1]} : vector<16x256xf32> to vector<16x32xf32>
    %78 = arith.truncf %77 : vector<16x32xf32> to vector<16x32xbf16>
    %79 = vector.extract_strided_slice %52 {offsets = [0, 128], sizes = [16, 32], strides = [1, 1]} : vector<16x256xf32> to vector<16x32xf32>
    %80 = arith.truncf %79 : vector<16x32xf32> to vector<16x32xbf16>
    %81 = vector.extract_strided_slice %25 {offsets = [0, 192], sizes = [16, 32], strides = [1, 1]} : vector<16x256xf32> to vector<16x32xf32>
    %82 = arith.truncf %81 : vector<16x32xf32> to vector<16x32xbf16>
    %cst_29 = arith.constant dense<0.000000e+00> : vector<16x16xf32>
    %83 = tpu.matmul %78, %80, %cst_29 {dimension_numbers = #tpu.dot_dimension_numbers<[1], [1], [0], [0], [0, 0, 1, 0], [], []>} : vector<16x32xbf16>, vector<16x32xbf16>, vector<16x16xf32> -> vector<16x16xf32>
    %cst_30 = arith.constant -1.000000e+30 : f32
    %84 = vector.broadcast %cst_30 : f32 to vector<16x16xf32>
    %85 = arith.select %55, %83, %84 : vector<16x16xi1>, vector<16x16xf32>
    %cst_31 = arith.constant dense<0xFF800000> : vector<16xf32>
    %86 = vector.multi_reduction <maximumf>, %85, %cst_31 [1] : vector<16x16xf32> to vector<16xf32>
    %87 = vector.shape_cast %86 : vector<16xf32> to vector<16x1xf32>
    %88 = vector.broadcast %87 : vector<16x1xf32> to vector<16x16xf32>
    %89 = arith.subf %85, %88 : vector<16x16xf32>
    %90 = math.exp %89 : vector<16x16xf32>
    %cst_32 = arith.constant dense<0.000000e+00> : vector<16xf32>
    %91 = vector.multi_reduction <add>, %90, %cst_32 [1] : vector<16x16xf32> to vector<16xf32>
    %92 = vector.shape_cast %91 : vector<16xf32> to vector<16x1xf32>
    %93 = arith.truncf %90 : vector<16x16xf32> to vector<16x16xbf16>
    %cst_33 = arith.constant dense<0.000000e+00> : vector<16x32xf32>
    %94 = tpu.matmul %93, %82, %cst_33 {dimension_numbers = #tpu.dot_dimension_numbers<[1], [0], [0], [1], [0, 0, 1, 1], [], []>} : vector<16x16xbf16>, vector<16x32xbf16>, vector<16x32xf32> -> vector<16x32xf32>
    %95 = tpu.reciprocal %92 {approx = true} : vector<16x1xf32> -> vector<16x1xf32>
    %96 = vector.broadcast %95 : vector<16x1xf32> to vector<16x32xf32>
    %97 = arith.mulf %94, %96 : vector<16x32xf32>
    %98 = vector.extract_strided_slice %52 {offsets = [0, 64], sizes = [16, 32], strides = [1, 1]} : vector<16x256xf32> to vector<16x32xf32>
    %99 = arith.truncf %98 : vector<16x32xf32> to vector<16x32xbf16>
    %100 = vector.extract_strided_slice %52 {offsets = [0, 160], sizes = [16, 32], strides = [1, 1]} : vector<16x256xf32> to vector<16x32xf32>
    %101 = arith.truncf %100 : vector<16x32xf32> to vector<16x32xbf16>
    %102 = vector.extract_strided_slice %25 {offsets = [0, 224], sizes = [16, 32], strides = [1, 1]} : vector<16x256xf32> to vector<16x32xf32>
    %103 = arith.truncf %102 : vector<16x32xf32> to vector<16x32xbf16>
    %cst_34 = arith.constant dense<0.000000e+00> : vector<16x16xf32>
    %104 = tpu.matmul %99, %101, %cst_34 {dimension_numbers = #tpu.dot_dimension_numbers<[1], [1], [0], [0], [0, 0, 1, 0], [], []>} : vector<16x32xbf16>, vector<16x32xbf16>, vector<16x16xf32> -> vector<16x16xf32>
    %cst_35 = arith.constant -1.000000e+30 : f32
    %105 = vector.broadcast %cst_35 : f32 to vector<16x16xf32>
    %106 = arith.select %55, %104, %105 : vector<16x16xi1>, vector<16x16xf32>
    %cst_36 = arith.constant dense<0xFF800000> : vector<16xf32>
    %107 = vector.multi_reduction <maximumf>, %106, %cst_36 [1] : vector<16x16xf32> to vector<16xf32>
    %108 = vector.shape_cast %107 : vector<16xf32> to vector<16x1xf32>
    %109 = vector.broadcast %108 : vector<16x1xf32> to vector<16x16xf32>
    %110 = arith.subf %106, %109 : vector<16x16xf32>
    %111 = math.exp %110 : vector<16x16xf32>
    %cst_37 = arith.constant dense<0.000000e+00> : vector<16xf32>
    %112 = vector.multi_reduction <add>, %111, %cst_37 [1] : vector<16x16xf32> to vector<16xf32>
    %113 = vector.shape_cast %112 : vector<16xf32> to vector<16x1xf32>
    %114 = arith.truncf %111 : vector<16x16xf32> to vector<16x16xbf16>
    %cst_38 = arith.constant dense<0.000000e+00> : vector<16x32xf32>
    %115 = tpu.matmul %114, %103, %cst_38 {dimension_numbers = #tpu.dot_dimension_numbers<[1], [0], [0], [1], [0, 0, 1, 1], [], []>} : vector<16x16xbf16>, vector<16x32xbf16>, vector<16x32xf32> -> vector<16x32xf32>
    %116 = tpu.reciprocal %113 {approx = true} : vector<16x1xf32> -> vector<16x1xf32>
    %117 = vector.broadcast %116 : vector<16x1xf32> to vector<16x32xf32>
    %118 = arith.mulf %115, %117 : vector<16x32xf32>
    %119 = vector.extract_strided_slice %52 {offsets = [0, 96], sizes = [16, 32], strides = [1, 1]} : vector<16x256xf32> to vector<16x32xf32>
    %120 = arith.truncf %119 : vector<16x32xf32> to vector<16x32xbf16>
    %121 = vector.extract_strided_slice %52 {offsets = [0, 160], sizes = [16, 32], strides = [1, 1]} : vector<16x256xf32> to vector<16x32xf32>
    %122 = arith.truncf %121 : vector<16x32xf32> to vector<16x32xbf16>
    %123 = vector.extract_strided_slice %25 {offsets = [0, 224], sizes = [16, 32], strides = [1, 1]} : vector<16x256xf32> to vector<16x32xf32>
    %124 = arith.truncf %123 : vector<16x32xf32> to vector<16x32xbf16>
    %cst_39 = arith.constant dense<0.000000e+00> : vector<16x16xf32>
    %125 = tpu.matmul %120, %122, %cst_39 {dimension_numbers = #tpu.dot_dimension_numbers<[1], [1], [0], [0], [0, 0, 1, 0], [], []>} : vector<16x32xbf16>, vector<16x32xbf16>, vector<16x16xf32> -> vector<16x16xf32>
    %cst_40 = arith.constant -1.000000e+30 : f32
    %126 = vector.broadcast %cst_40 : f32 to vector<16x16xf32>
    %127 = arith.select %55, %125, %126 : vector<16x16xi1>, vector<16x16xf32>
    %cst_41 = arith.constant dense<0xFF800000> : vector<16xf32>
    %128 = vector.multi_reduction <maximumf>, %127, %cst_41 [1] : vector<16x16xf32> to vector<16xf32>
    %129 = vector.shape_cast %128 : vector<16xf32> to vector<16x1xf32>
    %130 = vector.broadcast %129 : vector<16x1xf32> to vector<16x16xf32>
    %131 = arith.subf %127, %130 : vector<16x16xf32>
    %132 = math.exp %131 : vector<16x16xf32>
    %cst_42 = arith.constant dense<0.000000e+00> : vector<16xf32>
    %133 = vector.multi_reduction <add>, %132, %cst_42 [1] : vector<16x16xf32> to vector<16xf32>
    %134 = vector.shape_cast %133 : vector<16xf32> to vector<16x1xf32>
    %135 = arith.truncf %132 : vector<16x16xf32> to vector<16x16xbf16>
    %cst_43 = arith.constant dense<0.000000e+00> : vector<16x32xf32>
    %136 = tpu.matmul %135, %124, %cst_43 {dimension_numbers = #tpu.dot_dimension_numbers<[1], [0], [0], [1], [0, 0, 1, 1], [], []>} : vector<16x16xbf16>, vector<16x32xbf16>, vector<16x32xf32> -> vector<16x32xf32>
    %137 = tpu.reciprocal %134 {approx = true} : vector<16x1xf32> -> vector<16x1xf32>
    %138 = vector.broadcast %137 : vector<16x1xf32> to vector<16x32xf32>
    %139 = arith.mulf %136, %138 : vector<16x32xf32>
    %140 = tpu.concatenate %76, %97, %118, %139 in 1 : vector<16x32xf32>, vector<16x32xf32>, vector<16x32xf32>, vector<16x32xf32> -> vector<16x128xf32>
    %141 = arith.truncf %140 : vector<16x128xf32> to vector<16x128xbf16>
    %c0_44 = arith.constant 0 : index
    %c0_45 = arith.constant 0 : index
    %142 = vector.load %arg13[%c0_44, %c0_45] : memref<16x128xf32, #tpu.memory_space<vmem>>, vector<16x128xf32>
    %c0_46 = arith.constant 0 : index
    %c0_47 = arith.constant 0 : index
    %c0_48 = arith.constant 0 : index
    %143 = vector.load %arg8[%c0_46, %c0_47, %c0_48] : memref<1x128x128xbf16, #tpu.memory_space<vmem>>, vector<1x128x128xbf16>
    %144 = vector.shape_cast %143 : vector<1x128x128xbf16> to vector<128x128xbf16>
    %cst_49 = arith.constant dense<0.000000e+00> : vector<16x128xf32>
    %145 = tpu.matmul %141, %144, %cst_49 {dimension_numbers = #tpu.dot_dimension_numbers<[1], [0], [0], [1], [0, 0, 1, 1], [], []>} : vector<16x128xbf16>, vector<128x128xbf16>, vector<16x128xf32> -> vector<16x128xf32>
    %146 = arith.addf %142, %145 : vector<16x128xf32>
    %c0_50 = arith.constant 0 : index
    %c0_51 = arith.constant 0 : index
    %147 = vector.load %arg13[%c0_50, %c0_51] : memref<16x128xf32, #tpu.memory_space<vmem>>, vector<16x128xf32>
    tpu.vector_store %arg13[%c0_50, %c0_51], %146 {strides = array<i32>} : memref<16x128xf32, #tpu.memory_space<vmem>>, vector<16x128xf32>,
    %c0_52 = arith.constant 0 : index
    %c0_53 = arith.constant 0 : index
    %148 = vector.load %arg13[%c0_52, %c0_53] : memref<16x128xf32, #tpu.memory_space<vmem>>, vector<16x128xf32>
    %149 = arith.mulf %148, %148 : vector<16x128xf32>
    %cst_54 = arith.constant dense<0.000000e+00> : vector<16xf32>
    %150 = vector.multi_reduction <add>, %149, %cst_54 [1] : vector<16x128xf32> to vector<16xf32>
    %151 = vector.shape_cast %150 : vector<16xf32> to vector<16x1xf32>
    %cst_55 = arith.constant 1.280000e+02 : f32
    %152 = vector.broadcast %cst_55 : f32 to vector<16x1xf32>
    %153 = arith.divf %151, %152 : vector<16x1xf32>
    %cst_56 = arith.constant 9.99999974E-6 : f32
    %154 = vector.broadcast %cst_56 : f32 to vector<16x1xf32>
    %155 = arith.addf %153, %154 : vector<16x1xf32>
    %156 = math.rsqrt %155 : vector<16x1xf32>
    %157 = vector.broadcast %156 : vector<16x1xf32> to vector<16x128xf32>
    %158 = arith.mulf %148, %157 : vector<16x128xf32>
    %c0_57 = arith.constant 0 : index
    %c0_58 = arith.constant 0 : index
    %c0_59 = arith.constant 0 : index
    %159 = vector.load %arg9[%c0_57, %c0_58, %c0_59] : memref<1x1x128xf32, #tpu.memory_space<vmem>>, vector<1x1x128xf32>
    %160 = vector.shape_cast %159 : vector<1x1x128xf32> to vector<1x128xf32>
    %161 = vector.broadcast %160 : vector<1x128xf32> to vector<16x128xf32>
    %162 = arith.mulf %158, %161 : vector<16x128xf32>
    %163 = arith.truncf %162 : vector<16x128xf32> to vector<16x128xbf16>
    %c0_60 = arith.constant 0 : index
    %c0_61 = arith.constant 0 : index
    %c0_62 = arith.constant 0 : index
    %164 = vector.load %arg10[%c0_60, %c0_61, %c0_62] : memref<1x128x256xbf16, #tpu.memory_space<vmem>>, vector<1x128x256xbf16>
    %165 = vector.shape_cast %164 : vector<1x128x256xbf16> to vector<128x256xbf16>
    %cst_63 = arith.constant dense<0.000000e+00> : vector<16x256xf32>
    %166 = tpu.matmul %163, %165, %cst_63 {dimension_numbers = #tpu.dot_dimension_numbers<[1], [0], [0], [1], [0, 0, 1, 1], [], []>} : vector<16x128xbf16>, vector<128x256xbf16>, vector<16x256xf32> -> vector<16x256xf32>
    %167 = vector.extract_strided_slice %166 {offsets = [0, 0], sizes = [16, 128], strides = [1, 1]} : vector<16x256xf32> to vector<16x128xf32>
    %168 = vector.extract_strided_slice %166 {offsets = [0, 128], sizes = [16, 128], strides = [1, 1]} : vector<16x256xf32> to vector<16x128xf32>
    %169 = arith.negf %167 : vector<16x128xf32>
    %170 = math.exp %169 : vector<16x128xf32>
    %cst_64 = arith.constant 1.000000e+00 : f32
    %171 = vector.broadcast %cst_64 : f32 to vector<16x128xf32>
    %172 = arith.addf %171, %170 : vector<16x128xf32>
    %173 = arith.divf %171, %172 : vector<16x128xf32>
    %174 = arith.mulf %167, %173 : vector<16x128xf32>
    %175 = arith.mulf %174, %168 : vector<16x128xf32>
    %176 = arith.truncf %175 : vector<16x128xf32> to vector<16x128xbf16>
    %c0_65 = arith.constant 0 : index
    %c0_66 = arith.constant 0 : index
    %177 = vector.load %arg13[%c0_65, %c0_66] : memref<16x128xf32, #tpu.memory_space<vmem>>, vector<16x128xf32>
    %c0_67 = arith.constant 0 : index
    %c0_68 = arith.constant 0 : index
    %c0_69 = arith.constant 0 : index
    %178 = vector.load %arg11[%c0_67, %c0_68, %c0_69] : memref<1x128x128xbf16, #tpu.memory_space<vmem>>, vector<1x128x128xbf16>
    %179 = vector.shape_cast %178 : vector<1x128x128xbf16> to vector<128x128xbf16>
    %cst_70 = arith.constant dense<0.000000e+00> : vector<16x128xf32>
    %180 = tpu.matmul %176, %179, %cst_70 {dimension_numbers = #tpu.dot_dimension_numbers<[1], [0], [0], [1], [0, 0, 1, 1], [], []>} : vector<16x128xbf16>, vector<128x128xbf16>, vector<16x128xf32> -> vector<16x128xf32>
    %181 = arith.addf %177, %180 : vector<16x128xf32>
    %c0_71 = arith.constant 0 : index
    %c0_72 = arith.constant 0 : index
    %182 = vector.load %arg13[%c0_71, %c0_72] : memref<16x128xf32, #tpu.memory_space<vmem>>, vector<16x128xf32>
    tpu.vector_store %arg13[%c0_71, %c0_72], %181 {strides = array<i32>} : memref<16x128xf32, #tpu.memory_space<vmem>>, vector<16x128xf32>,
    %c1_i32_73 = arith.constant 1 : i32
    %183 = arith.cmpi eq, %arg0, %c1_i32_73 : i32
    %184 = arith.extui %183 : i1 to i32
    %c0_i32_74 = arith.constant 0 : i32
    %185 = arith.cmpi ne, %184, %c0_i32_74 : i32
    scf.if %185 {
      %c0_75 = arith.constant 0 : index
      %c0_76 = arith.constant 0 : index
      %186 = vector.load %arg13[%c0_75, %c0_76] : memref<16x128xf32, #tpu.memory_space<vmem>>, vector<16x128xf32>
      %187 = arith.mulf %186, %186 : vector<16x128xf32>
      %cst_77 = arith.constant dense<0.000000e+00> : vector<16xf32>
      %188 = vector.multi_reduction <add>, %187, %cst_77 [1] : vector<16x128xf32> to vector<16xf32>
      %189 = vector.shape_cast %188 : vector<16xf32> to vector<16x1xf32>
      %cst_78 = arith.constant 1.280000e+02 : f32
      %190 = vector.broadcast %cst_78 : f32 to vector<16x1xf32>
      %191 = arith.divf %189, %190 : vector<16x1xf32>
      %cst_79 = arith.constant 9.99999974E-6 : f32
      %192 = vector.broadcast %cst_79 : f32 to vector<16x1xf32>
      %193 = arith.addf %191, %192 : vector<16x1xf32>
      %194 = math.rsqrt %193 : vector<16x1xf32>
      %195 = vector.broadcast %194 : vector<16x1xf32> to vector<16x128xf32>
      %196 = arith.mulf %186, %195 : vector<16x128xf32>
      %c0_80 = arith.constant 0 : index
      %c0_81 = arith.constant 0 : index
      %197 = vector.load %arg4[%c0_80, %c0_81] : memref<1x128xf32, #tpu.memory_space<vmem>>, vector<1x128xf32>
      %198 = vector.broadcast %197 : vector<1x128xf32> to vector<16x128xf32>
      %199 = arith.mulf %196, %198 : vector<16x128xf32>
      %200 = arith.truncf %199 : vector<16x128xf32> to vector<16x128xbf16>
      %c0_82 = arith.constant 0 : index
      %c0_83 = arith.constant 0 : index
      %201 = vector.load %arg12[%c0_82, %c0_83] : memref<16x128xbf16, #tpu.memory_space<vmem>>, vector<16x128xbf16>
      tpu.vector_store %arg12[%c0_82, %c0_83], %200 {strides = array<i32>} : memref<16x128xbf16, #tpu.memory_space<vmem>>, vector<16x128xbf16>,
    } else {
    }
    return
  }
  func.func @transform_0(%arg0: i32) -> (i32, i32) {
    %c0_i32 = arith.constant 0 : i32
    %c0_i32_0 = arith.constant 0 : i32
    %c0_i32_1 = arith.constant 0 : i32
    return %c0_i32, %c0_i32_0 : i32, i32
  }
  func.func @transform_1(%arg0: i32) -> (i32, i32) {
    %c0_i32 = arith.constant 0 : i32
    %c0_i32_0 = arith.constant 0 : i32
    %c0_i32_1 = arith.constant 0 : i32
    return %c0_i32, %c0_i32_0 : i32, i32
  }
  func.func @transform_2(%arg0: i32) -> (i32, i32) {
    %c0_i32 = arith.constant 0 : i32
    %c0_i32_0 = arith.constant 0 : i32
    %c0_i32_1 = arith.constant 0 : i32
    return %c0_i32, %c0_i32_0 : i32, i32
  }
  func.func @transform_3(%arg0: i32) -> (i32, i32) {
    %c0_i32 = arith.constant 0 : i32
    %c0_i32_0 = arith.constant 0 : i32
    %c0_i32_1 = arith.constant 0 : i32
    return %c0_i32, %c0_i32_0 : i32, i32
  }
  func.func @transform_4(%arg0: i32) -> (i32, i32, i32) {
    %c0_i32 = arith.constant 0 : i32
    %c0_i32_0 = arith.constant 0 : i32
    %c0_i32_1 = arith.constant 0 : i32
    return %arg0, %c0_i32, %c0_i32_0 : i32, i32, i32
  }
  func.func @transform_5(%arg0: i32) -> (i32, i32, i32) {
    %c0_i32 = arith.constant 0 : i32
    %c0_i32_0 = arith.constant 0 : i32
    %c0_i32_1 = arith.constant 0 : i32
    return %arg0, %c0_i32, %c0_i32_0 : i32, i32, i32
  }
  func.func @transform_6(%arg0: i32) -> (i32, i32, i32) {
    %c0_i32 = arith.constant 0 : i32
    %c0_i32_0 = arith.constant 0 : i32
    %c0_i32_1 = arith.constant 0 : i32
    return %arg0, %c0_i32, %c0_i32_0 : i32, i32, i32
  }
  func.func @transform_7(%arg0: i32) -> (i32, i32, i32) {
    %c0_i32 = arith.constant 0 : i32
    %c0_i32_0 = arith.constant 0 : i32
    %c0_i32_1 = arith.constant 0 : i32
    return %arg0, %c0_i32, %c0_i32_0 : i32, i32, i32
  }
  func.func @transform_8(%arg0: i32) -> (i32, i32, i32) {
    %c0_i32 = arith.constant 0 : i32
    %c0_i32_0 = arith.constant 0 : i32
    %c0_i32_1 = arith.constant 0 : i32
    return %arg0, %c0_i32, %c0_i32_0 : i32, i32, i32
  }
  func.func @transform_9(%arg0: i32) -> (i32, i32, i32) {
    %c0_i32 = arith.constant 0 : i32
    %c0_i32_0 = arith.constant 0 : i32
    %c0_i32_1 = arith.constant 0 : i32
    return %arg0, %c0_i32, %c0_i32_0 : i32, i32, i32
  }
  func.func @transform_10(%arg0: i32) -> (i32, i32, i32) {
    %c0_i32 = arith.constant 0 : i32
    %c0_i32_0 = arith.constant 0 : i32
    %c0_i32_1 = arith.constant 0 : i32
    return %arg0, %c0_i32, %c0_i32_0 : i32, i32, i32
  }
  func.func @transform_11(%arg0: i32) -> (i32, i32) {
    %c0_i32 = arith.constant 0 : i32
    %c0_i32_0 = arith.constant 0 : i32
    %c0_i32_1 = arith.constant 0 : i32
    return %c0_i32, %c0_i32_0 : i32, i32
  }
}

</mosaic_0001>

<llo_original>
// kernel: tpu_custom_call.1
$region0: #{tpu_custom_call.1}
  #allocation0 [shape = 'u32[]', space=smem, size = 0x4, offset = 0x4, fixed_abs, tag = 'smem constant byte address 0x4 - core index']
  #allocation1 [shape = 'u32[144,128]{1,0:T(1,128)}', space=vmem, size = 0x12000, scoped, tag = 'internal scratch']
  #allocation2 [shape = 'f32[16,128]{1,0:T(8,128)}', space=vmem, size = 0x2000, scoped, tag = 'scratch operand']
  %s0 = inlined_call_operand.hbm [shape: bf16[16,128], index: 0, kind: input, shape index: {}]
  %s1 = inlined_call_operand.hbm [shape: f32[16,256], index: 1, kind: input, shape index: {}]
  %s2 = inlined_call_operand.hbm [shape: f32[16,256], index: 2, kind: input, shape index: {}]
  %s3 = inlined_call_operand.vmem [shape: f32[1,128], index: 3, kind: input, shape index: {}]
  %s4 = inlined_call_operand.vmem [shape: f32[2,1,128], index: 4, kind: input, shape index: {}]
  %s5 = inlined_call_operand.hbm [shape: bf16[2,128,256], index: 5, kind: input, shape index: {}]
  %s6 = inlined_call_operand.vmem [shape: f32[2,1,256], index: 6, kind: input, shape index: {}]
  %s7 = inlined_call_operand.hbm [shape: bf16[2,128,128], index: 7, kind: input, shape index: {}]
  %s8 = inlined_call_operand.vmem [shape: f32[2,1,128], index: 8, kind: input, shape index: {}]
  %s9 = inlined_call_operand.hbm [shape: bf16[2,128,256], index: 9, kind: input, shape index: {}]
  %s10 = inlined_call_operand.hbm [shape: bf16[2,128,128], index: 10, kind: input, shape index: {}]
  %s11 = inlined_call_operand.hbm [shape: bf16[16,128], index: 11, kind: output, shape index: {}]
  %s12 = sld [smem:[#allocation0]]
  $region113: #{tpu_custom_call.1} parent=0
    _
  %s14 = ssub.s32 1, %s12
  %s15 = scalar_select 0, %s14, %s12
  $region1: #{tpu_custom_call.1} parent=0
    #allocation3 [shape = 'u8[4096]{0}', space=vmem, size = 0x1000, scoped, tag = 'input window, operand 0, single buffered']
    #allocation4 [shape = 's32[2]{0}', space=sflag, size = 0x8, scoped, tag = 'scoped memory for tpu_custom_call.1']
    #allocation5 [shape = 's32[2]{0}', space=sflag, size = 0x8, scoped, tag = 'scoped memory for tpu_custom_call.1']
    #allocation6 [shape = 'u8[16384]{0}', space=vmem, size = 0x4000, scoped, tag = 'input window, operand 1, single buffered']
    #allocation7 [shape = 's32[1]{0}', space=sflag, size = 0x4, scoped, tag = 'scoped memory for tpu_custom_call.1']
    #allocation8 [shape = 'u8[16384]{0}', space=vmem, size = 0x4000, scoped, tag = 'input window, operand 2, single buffered']
    #allocation9 [shape = 'u8[131072]{0}', space=vmem, size = 0x20000, scoped, tag = 'input window, operand 5']
    #allocation10 [shape = 's32[2]{0}', space=sflag, size = 0x8, scoped, tag = 'scoped memory for tpu_custom_call.1']
    #allocation11 [shape = 'u8[65536]{0}', space=vmem, size = 0x10000, scoped, tag = 'input window, operand 7']
    #allocation12 [shape = 'u8[131072]{0}', space=vmem, size = 0x20000, scoped, tag = 'input window, operand 9']
    #allocation13 [shape = 's32[2]{0}', space=sflag, size = 0x8, scoped, tag = 'scoped memory for tpu_custom_call.1']
    #allocation14 [shape = 'u8[65536]{0}', space=vmem, size = 0x10000, scoped, tag = 'input window, operand 10']
    #allocation15 [shape = 'u8[4096]{0}', space=vmem, size = 0x1000, scoped, tag = 'output window, operand 0, single buffered']
    %16 = vsyncpa [#allocation4], 0
    %17 = vsyncpa [#allocation7], 0
    %18 = vsyncpa [#allocation10], 0
    %s19 = scalar_lea.sflag [#allocation10], 1
    %20 = vsyncpa %s19, 0
    %21 = vsyncpa [#allocation13], 0
    %s22 = scalar_lea.sflag [#allocation13], 1
    %23 = vsyncpa %s22, 0
    %24 = vsyncpa [#allocation5], 0
    loop: start=0, step=1, limit=4
    $region2: #{tpu_custom_call.1} parent=1 // loop_pre_header
      _
    $region3: #{tpu_custom_call.1} parent=1 // loop_header
      %s26 = sphi 0, %s30
      %p27 = scmp.ge.s32.totalorder %s26, 4
      %s34 = sphi 0, %s34
      %s36 = sphi 0, %s34
      %s37 = sphi 0, %s36
      %s51 = sphi 0, %s37
      %s55 = sphi 0, %s55
      %s57 = sphi 0, %s55
      %s58 = sphi 0, %s57
      %s72 = sphi 0, %s58
      %s76 = sphi 0, %s76
      %s78 = sphi 0, %s76
      %s79 = sphi 0, %s78
      %s93 = sphi 0, %s79
      %s97 = sphi 0, %s97
      %s99 = sphi 0, %s97
      %s100 = sphi 0, %s99
      %s114 = sphi 0, %s100
      %s120 = sphi 0, %s122
      %s123 = sphi 0, %s120
      %s124 = sphi 0, %s123
      %s140 = sphi 0, %s124
      %s146 = sphi 0, %s148
      %s149 = sphi 0, %s146
      %s150 = sphi 0, %s149
      %s166 = sphi 0, %s150
      %s172 = sphi 0, %s174
      %s175 = sphi 0, %s172
      %s176 = sphi 0, %s175
      %s192 = sphi 0, %s176
      %s198 = sphi 0, %s200
      %s201 = sphi 0, %s198
      %s202 = sphi 0, %s201
      %s218 = sphi 0, %s202
      %s224 = sphi 0, %s226
      %s227 = sphi 0, %s224
      %s228 = sphi 0, %s227
      %s244 = sphi 0, %s228
      %s250 = sphi 0, %s252
      %s253 = sphi 0, %s250
      %s254 = sphi 0, %s253
      %s270 = sphi 0, %s254
      %s276 = sphi 0, %s278
      %s279 = sphi 0, %s276
      %s280 = sphi 0, %s279
      %s296 = sphi 0, %s280
      %s300 = sphi 0, %s300
      %s302 = sphi 0, %s300
      %s303 = sphi 0, %s302
      %s317 = sphi 0, %s303
    $region4: #{tpu_custom_call.1} parent=1 // loop_header_branch
      %29 = sbr.rel (%p27) target = $region8
    $region5: #{tpu_custom_call.1} parent=1 // loop_body
      %s31 = ssub.s32 %s26, 1
      %s32 = ssub.s32 %s26, 2
      %s33 = sadd.s32 %s26, 1
      %s35 = sadd.s32 %s34, 1
      %p38 = scmp.eq.s32.totalorder %s26, 1
      %p39 = scmp.ne.s32.totalorder %s34, %s36
      %p40 = scmp.eq.s32.totalorder %s26, 0
      %p41 = por %p39, %p40
      %p42 = scmp.ne.s32.totalorder %s34, %s36
      %p43 = scmp.eq.s32.totalorder %s31, 1
      %p44 = por %p42, %p43
      %p45 = scmp.ne.s32.totalorder %s36, %s37
      %p46 = scmp.eq.s32.totalorder %s31, 0
      %p47 = por %p45, %p46
      %p48 = scmp.ne.s32.totalorder %s36, %s37
      %p49 = scmp.eq.s32.totalorder %s32, 1
      %p50 = por %p48, %p49
      %p52 = scmp.ne.s32.totalorder %s37, %s51
      %p53 = scmp.eq.s32.totalorder %s32, 0
      %p54 = por %p52, %p53
      %s56 = sadd.s32 %s55, 1
      %p59 = scmp.eq.s32.totalorder %s26, 1
      %p60 = scmp.ne.s32.totalorder %s55, %s57
      %p61 = scmp.eq.s32.totalorder %s26, 0
      %p62 = por %p60, %p61
      %p63 = scmp.ne.s32.totalorder %s55, %s57
      %p64 = scmp.eq.s32.totalorder %s31, 1
      %p65 = por %p63, %p64
      %p66 = scmp.ne.s32.totalorder %s57, %s58
      %p67 = scmp.eq.s32.totalorder %s31, 0
      %p68 = por %p66, %p67
      %p69 = scmp.ne.s32.totalorder %s57, %s58
      %p70 = scmp.eq.s32.totalorder %s32, 1
      %p71 = por %p69, %p70
      %p73 = scmp.ne.s32.totalorder %s58, %s72
      %p74 = scmp.eq.s32.totalorder %s32, 0
      %p75 = por %p73, %p74
      %s77 = sadd.s32 %s76, 1
      %p80 = scmp.eq.s32.totalorder %s26, 1
      %p81 = scmp.ne.s32.totalorder %s76, %s78
      %p82 = scmp.eq.s32.totalorder %s26, 0
      %p83 = por %p81, %p82
      %p84 = scmp.ne.s32.totalorder %s76, %s78
      %p85 = scmp.eq.s32.totalorder %s31, 1
      %p86 = por %p84, %p85
      %p87 = scmp.ne.s32.totalorder %s78, %s79
      %p88 = scmp.eq.s32.totalorder %s31, 0
      %p89 = por %p87, %p88
      %p90 = scmp.ne.s32.totalorder %s78, %s79
      %p91 = scmp.eq.s32.totalorder %s32, 1
      %p92 = por %p90, %p91
      %p94 = scmp.ne.s32.totalorder %s79, %s93
      %p95 = scmp.eq.s32.totalorder %s32, 0
      %p96 = por %p94, %p95
      %s98 = sadd.s32 %s97, 1
      %p101 = scmp.eq.s32.totalorder %s26, 1
      %p102 = scmp.ne.s32.totalorder %s97, %s99
      %p103 = scmp.eq.s32.totalorder %s26, 0
      %p104 = por %p102, %p103
      %p105 = scmp.ne.s32.totalorder %s97, %s99
      %p106 = scmp.eq.s32.totalorder %s31, 1
      %p107 = por %p105, %p106
      %p108 = scmp.ne.s32.totalorder %s99, %s100
      %p109 = scmp.eq.s32.totalorder %s31, 0
      %p110 = por %p108, %p109
      %p111 = scmp.ne.s32.totalorder %s99, %s100
      %p112 = scmp.eq.s32.totalorder %s32, 1
      %p113 = por %p111, %p112
      %p115 = scmp.ne.s32.totalorder %s100, %s114
      %p116 = scmp.eq.s32.totalorder %s32, 0
      %p117 = por %p115, %p116
      %s118 = ssub.s32 %s26, %s33
      %p119 = scmp.eq.s32.totalorder %s118, 0
      %s121 = sadd.s32 %s120, 1
      %s122 = scalar_select %p119, %s120, %s121
      %p125 = pneg %p119
      %p126 = scmp.eq.s32.totalorder %s26, 1
      %p127 = por %p125, %p126
      %p128 = scmp.ne.s32.totalorder %s120, %s123
      %p129 = scmp.eq.s32.totalorder %s26, 0
      %p130 = por %p128, %p129
      %p131 = scmp.ne.s32.totalorder %s120, %s123
      %p132 = scmp.eq.s32.totalorder %s31, 1
      %p133 = por %p131, %p132
      %p134 = scmp.ne.s32.totalorder %s123, %s124
      %p135 = scmp.eq.s32.totalorder %s31, 0
      %p136 = por %p134, %p135
      %p137 = scmp.ne.s32.totalorder %s123, %s124
      %p138 = scmp.eq.s32.totalorder %s32, 1
      %p139 = por %p137, %p138
      %p141 = scmp.ne.s32.totalorder %s124, %s140
      %p142 = scmp.eq.s32.totalorder %s32, 0
      %p143 = por %p141, %p142
      %s144 = ssub.s32 %s26, %s33
      %p145 = scmp.eq.s32.totalorder %s144, 0
      %s147 = sadd.s32 %s146, 1
      %s148 = scalar_select %p145, %s146, %s147
      %p151 = pneg %p145
      %p152 = scmp.eq.s32.totalorder %s26, 1
      %p153 = por %p151, %p152
      %p154 = scmp.ne.s32.totalorder %s146, %s149
      %p155 = scmp.eq.s32.totalorder %s26, 0
      %p156 = por %p154, %p155
      %p157 = scmp.ne.s32.totalorder %s146, %s149
      %p158 = scmp.eq.s32.totalorder %s31, 1
      %p159 = por %p157, %p158
      %p160 = scmp.ne.s32.totalorder %s149, %s150
      %p161 = scmp.eq.s32.totalorder %s31, 0
      %p162 = por %p160, %p161
      %p163 = scmp.ne.s32.totalorder %s149, %s150
      %p164 = scmp.eq.s32.totalorder %s32, 1
      %p165 = por %p163, %p164
      %p167 = scmp.ne.s32.totalorder %s150, %s166
      %p168 = scmp.eq.s32.totalorder %s32, 0
      %p169 = por %p167, %p168
      %s170 = ssub.s32 %s26, %s33
      %p171 = scmp.eq.s32.totalorder %s170, 0
      %s173 = sadd.s32 %s172, 1
      %s174 = scalar_select %p171, %s172, %s173
      %p177 = pneg %p171
      %p178 = scmp.eq.s32.totalorder %s26, 1
      %p179 = por %p177, %p178
      %p180 = scmp.ne.s32.totalorder %s172, %s175
      %p181 = scmp.eq.s32.totalorder %s26, 0
      %p182 = por %p180, %p181
      %p183 = scmp.ne.s32.totalorder %s172, %s175
      %p184 = scmp.eq.s32.totalorder %s31, 1
      %p185 = por %p183, %p184
      %p186 = scmp.ne.s32.totalorder %s175, %s176
      %p187 = scmp.eq.s32.totalorder %s31, 0
      %p188 = por %p186, %p187
      %p189 = scmp.ne.s32.totalorder %s175, %s176
      %p190 = scmp.eq.s32.totalorder %s32, 1
      %p191 = por %p189, %p190
      %p193 = scmp.ne.s32.totalorder %s176, %s192
      %p194 = scmp.eq.s32.totalorder %s32, 0
      %p195 = por %p193, %p194
      %s196 = ssub.s32 %s26, %s33
      %p197 = scmp.eq.s32.totalorder %s196, 0
      %s199 = sadd.s32 %s198, 1
      %s200 = scalar_select %p197, %s198, %s199
      %p203 = pneg %p197
      %p204 = scmp.eq.s32.totalorder %s26, 1
      %p205 = por %p203, %p204
      %p206 = scmp.ne.s32.totalorder %s198, %s201
      %p207 = scmp.eq.s32.totalorder %s26, 0
      %p208 = por %p206, %p207
      %p209 = scmp.ne.s32.totalorder %s198, %s201
      %p210 = scmp.eq.s32.totalorder %s31, 1
      %p211 = por %p209, %p210
      %p212 = scmp.ne.s32.totalorder %s201, %s202
      %p213 = scmp.eq.s32.totalorder %s31, 0
      %p214 = por %p212, %p213
      %p215 = scmp.ne.s32.totalorder %s201, %s202
      %p216 = scmp.eq.s32.totalorder %s32, 1
      %p217 = por %p215, %p216
      %p219 = scmp.ne.s32.totalorder %s202, %s218
      %p220 = scmp.eq.s32.totalorder %s32, 0
      %p221 = por %p219, %p220
      %s222 = ssub.s32 %s26, %s33
      %p223 = scmp.eq.s32.totalorder %s222, 0
      %s225 = sadd.s32 %s224, 1
      %s226 = scalar_select %p223, %s224, %s225
      %p229 = pneg %p223
      %p230 = scmp.eq.s32.totalorder %s26, 1
      %p231 = por %p229, %p230
      %p232 = scmp.ne.s32.totalorder %s224, %s227
      %p233 = scmp.eq.s32.totalorder %s26, 0
      %p234 = por %p232, %p233
      %p235 = scmp.ne.s32.totalorder %s224, %s227
      %p236 = scmp.eq.s32.totalorder %s31, 1
      %p237 = por %p235, %p236
      %p238 = scmp.ne.s32.totalorder %s227, %s228
      %p239 = scmp.eq.s32.totalorder %s31, 0
      %p240 = por %p238, %p239
      %p241 = scmp.ne.s32.totalorder %s227, %s228
      %p242 = scmp.eq.s32.totalorder %s32, 1
      %p243 = por %p241, %p242
      %p245 = scmp.ne.s32.totalorder %s228, %s244
      %p246 = scmp.eq.s32.totalorder %s32, 0
      %p247 = por %p245, %p246
      %s248 = ssub.s32 %s26, %s33
      %p249 = scmp.eq.s32.totalorder %s248, 0
      %s251 = sadd.s32 %s250, 1
      %s252 = scalar_select %p249, %s250, %s251
      %p255 = pneg %p249
      %p256 = scmp.eq.s32.totalorder %s26, 1
      %p257 = por %p255, %p256
      %p258 = scmp.ne.s32.totalorder %s250, %s253
      %p259 = scmp.eq.s32.totalorder %s26, 0
      %p260 = por %p258, %p259
      %p261 = scmp.ne.s32.totalorder %s250, %s253
      %p262 = scmp.eq.s32.totalorder %s31, 1
      %p263 = por %p261, %p262
      %p264 = scmp.ne.s32.totalorder %s253, %s254
      %p265 = scmp.eq.s32.totalorder %s31, 0
      %p266 = por %p264, %p265
      %p267 = scmp.ne.s32.totalorder %s253, %s254
      %p268 = scmp.eq.s32.totalorder %s32, 1
      %p269 = por %p267, %p268
      %p271 = scmp.ne.s32.totalorder %s254, %s270
      %p272 = scmp.eq.s32.totalorder %s32, 0
      %p273 = por %p271, %p272
      %s274 = ssub.s32 %s26, %s33
      %p275 = scmp.eq.s32.totalorder %s274, 0
      %s277 = sadd.s32 %s276, 1
      %s278 = scalar_select %p275, %s276, %s277
      %p281 = pneg %p275
      %p282 = scmp.eq.s32.totalorder %s26, 1
      %p283 = por %p281, %p282
      %p284 = scmp.ne.s32.totalorder %s276, %s279
      %p285 = scmp.eq.s32.totalorder %s26, 0
      %p286 = por %p284, %p285
      %p287 = scmp.ne.s32.totalorder %s276, %s279
      %p288 = scmp.eq.s32.totalorder %s31, 1
      %p289 = por %p287, %p288
      %p290 = scmp.ne.s32.totalorder %s279, %s280
      %p291 = scmp.eq.s32.totalorder %s31, 0
      %p292 = por %p290, %p291
      %p293 = scmp.ne.s32.totalorder %s279, %s280
      %p294 = scmp.eq.s32.totalorder %s32, 1
      %p295 = por %p293, %p294
      %p297 = scmp.ne.s32.totalorder %s280, %s296
      %p298 = scmp.eq.s32.totalorder %s32, 0
      %p299 = por %p297, %p298
      %s301 = sadd.s32 %s300, 1
      %p304 = scmp.eq.s32.totalorder %s26, 1
      %p305 = scmp.ne.s32.totalorder %s300, %s302
      %p306 = scmp.eq.s32.totalorder %s26, 0
      %p307 = por %p305, %p306
      %p308 = scmp.ne.s32.totalorder %s300, %s302
      %p309 = scmp.eq.s32.totalorder %s31, 1
      %p310 = por %p308, %p309
      %p311 = scmp.ne.s32.totalorder %s302, %s303
      %p312 = scmp.eq.s32.totalorder %s31, 0
      %p313 = por %p311, %p312
      %p314 = scmp.ne.s32.totalorder %s302, %s303
      %p315 = scmp.eq.s32.totalorder %s32, 1
      %p316 = por %p314, %p315
      %p318 = scmp.ne.s32.totalorder %s303, %s317
      %p319 = scmp.eq.s32.totalorder %s32, 0
      %p320 = por %p318, %p319
      %p321 = scmp.le.s32.totalorder 1, %s26
      %p322 = scmp.lt.s32.totalorder %s26, 3
      %p323 = pnand %p321, %p322
      %p324 = pneg %p323
      // Predicated region
      $region9: #{tpu_custom_call.1} parent=5 // pred_check
        _
      $region10: #{tpu_custom_call.1} parent=5 // pred_check_branch
        %326 = sbr.rel (%p323) target = $region12
      $region11: #{tpu_custom_call.1} parent=5 // pred_region
        %s327 = ssub.s32 %s26, 1
        // Predicated region
        $region13: #{tpu_custom_call.1} parent=11 // pred_check
          %p328 = pneg %p47
        $region14: #{tpu_custom_call.1} parent=11 // pred_check_branch
          %330 = sbr.rel (%p328) target = $region16
        $region15: #{tpu_custom_call.1} parent=11 // pred_region
          %s332 = ssub.s32 128, 128
          %333 = vsyncadd [#allocation4], %s332
          %s334 = sshll.u32 [#allocation3], 4
          %s335 = int_to_ptr.vmem [resolvable:$true] %s334
          %340 = dma.hbm_to_vmem [thread:$0]  %s0, 128, %s335, [#allocation4], 64, 64, 4
        $region16: #{tpu_custom_call.1} parent=11 // pred_fallthru
          _
        // Predicated region
        $region17: #{tpu_custom_call.1} parent=11 // pred_check
          %p341 = pneg %p68
        $region18: #{tpu_custom_call.1} parent=11 // pred_check_branch
          %343 = sbr.rel (%p341) target = $region20
        $region19: #{tpu_custom_call.1} parent=11 // pred_region
          %s345 = ssub.s32 512, 512
          %346 = vsyncadd [#allocation7], %s345
          %s347 = sshll.u32 [#allocation6], 4
          %s348 = int_to_ptr.vmem [resolvable:$true] %s347
          %353 = dma.hbm_to_vmem [thread:$0]  %s1, 512, %s348, [#allocation7], 256, 256, 16
        $region20: #{tpu_custom_call.1} parent=11 // pred_fallthru
          _
        // Predicated region
        $region21: #{tpu_custom_call.1} parent=11 // pred_check
          %p354 = pneg %p89
        $region22: #{tpu_custom_call.1} parent=11 // pred_check_branch
          %356 = sbr.rel (%p354) target = $region24
        $region23: #{tpu_custom_call.1} parent=11 // pred_region
          %s358 = ssub.s32 512, 512
          %359 = vsyncadd [#allocation7], %s358
          %s360 = sshll.u32 [#allocation8], 4
          %s361 = int_to_ptr.vmem [resolvable:$true] %s360
          %366 = dma.hbm_to_vmem [thread:$0]  %s2, 512, %s361, [#allocation7], 256, 256, 16
        $region24: #{tpu_custom_call.1} parent=11 // pred_fallthru
          _
        // Predicated region
        $region25: #{tpu_custom_call.1} parent=11 // pred_check
          %p367 = pneg %p110
        $region26: #{tpu_custom_call.1} parent=11 // pred_check_branch
          %369 = sbr.rel (%p367) target = $region28
        $region27: #{tpu_custom_call.1} parent=11 // pred_region
          _
        $region28: #{tpu_custom_call.1} parent=11 // pred_fallthru
          _
      $region12: #{tpu_custom_call.1} parent=5 // pred_fallthru
        _
      %p370 = scmp.lt.s32.totalorder %s26, 2
      // Predicated region
      $region29: #{tpu_custom_call.1} parent=5 // pred_check
        %p371 = pneg %p370
      $region30: #{tpu_custom_call.1} parent=5 // pred_check_branch
        %373 = sbr.rel (%p371) target = $region32
      $region31: #{tpu_custom_call.1} parent=5 // pred_region
        // Predicated region
        $region33: #{tpu_custom_call.1} parent=31 // pred_check
          %p374 = pneg %p130
        $region34: #{tpu_custom_call.1} parent=31 // pred_check_branch
          %376 = sbr.rel (%p374) target = $region36
        $region35: #{tpu_custom_call.1} parent=31 // pred_region
          %p377 = scmp.lt.s32.totalorder %s26, 1
          %s378 = scalar_select %p377, %s26, 1
          %s379 = scalar_lea.vmem %s4, %s378
        $region36: #{tpu_custom_call.1} parent=31 // pred_fallthru
          _
        // Predicated region
        $region37: #{tpu_custom_call.1} parent=31 // pred_check
          %p380 = pneg %p156
        $region38: #{tpu_custom_call.1} parent=31 // pred_check_branch
          %382 = sbr.rel (%p380) target = $region40
        $region39: #{tpu_custom_call.1} parent=31 // pred_region
          %s383 = sand.u32 %s26, 1
          %s384 = scalar_lea.sflag [#allocation10], %s383
          %s385 = sand.u32 %s146, 1
          %s386 = smul.addr %s385, 128
          %s387 = scalar_lea.vmem [#allocation9], %s386
          %s389 = ssub.s32 2048, 2048
          %390 = vsyncadd %s384, %s389
          %s391 = smul.addr %s26, 32
          %s392 = smul.addr %s391, 64
          %s393 = scalar_lea.hbm %s5, %s392
          %s394 = sshll.u32 %s387, 4
          %s395 = int_to_ptr.vmem [resolvable:$true] %s394
          %400 = dma.hbm_to_vmem [thread:$0]  %s393, 2048, %s395, %s384, 128, 128, 8
        $region40: #{tpu_custom_call.1} parent=31 // pred_fallthru
          _
        // Predicated region
        $region41: #{tpu_custom_call.1} parent=31 // pred_check
          %p401 = pneg %p182
        $region42: #{tpu_custom_call.1} parent=31 // pred_check_branch
          %403 = sbr.rel (%p401) target = $region44
        $region43: #{tpu_custom_call.1} parent=31 // pred_region
          %p404 = scmp.lt.s32.totalorder %s26, 1
          %s405 = scalar_select %p404, %s26, 1
          %s406 = smul.addr %s405, 2
          %s407 = scalar_lea.vmem %s6, %s406
        $region44: #{tpu_custom_call.1} parent=31 // pred_fallthru
          _
        // Predicated region
        $region45: #{tpu_custom_call.1} parent=31 // pred_check
          %p408 = pneg %p208
        $region46: #{tpu_custom_call.1} parent=31 // pred_check_branch
          %410 = sbr.rel (%p408) target = $region48
        $region47: #{tpu_custom_call.1} parent=31 // pred_region
          %s411 = sand.u32 %s26, 1
          %s412 = scalar_lea.sflag [#allocation10], %s411
          %s413 = sand.u32 %s198, 1
          %s414 = smul.addr %s413, 64
          %s415 = scalar_lea.vmem [#allocation11], %s414
          %s417 = ssub.s32 1024, 1024
          %418 = vsyncadd %s412, %s417
          %s419 = smul.addr %s26, 16
          %s420 = smul.addr %s419, 64
          %s421 = scalar_lea.hbm %s7, %s420
          %s422 = sshll.u32 %s415, 4
          %s423 = int_to_ptr.vmem [resolvable:$true] %s422
          %428 = dma.hbm_to_vmem [thread:$0]  %s421, 1024, %s423, %s412, 64, 64, 4
        $region48: #{tpu_custom_call.1} parent=31 // pred_fallthru
          _
        // Predicated region
        $region49: #{tpu_custom_call.1} parent=31 // pred_check
          %p429 = pneg %p234
        $region50: #{tpu_custom_call.1} parent=31 // pred_check_branch
          %431 = sbr.rel (%p429) target = $region52
        $region51: #{tpu_custom_call.1} parent=31 // pred_region
          %p432 = scmp.lt.s32.totalorder %s26, 1
          %s433 = scalar_select %p432, %s26, 1
          %s434 = scalar_lea.vmem %s8, %s433
        $region52: #{tpu_custom_call.1} parent=31 // pred_fallthru
          _
        // Predicated region
        $region53: #{tpu_custom_call.1} parent=31 // pred_check
          %p435 = pneg %p260
        $region54: #{tpu_custom_call.1} parent=31 // pred_check_branch
          %437 = sbr.rel (%p435) target = $region56
        $region55: #{tpu_custom_call.1} parent=31 // pred_region
          %s438 = sand.u32 %s26, 1
          %s439 = scalar_lea.sflag [#allocation13], %s438
          %s440 = sand.u32 %s250, 1
          %s441 = smul.addr %s440, 128
          %s442 = scalar_lea.vmem [#allocation12], %s441
          %s444 = ssub.s32 2048, 2048
          %445 = vsyncadd %s439, %s444
          %s446 = smul.addr %s26, 32
          %s447 = smul.addr %s446, 64
          %s448 = scalar_lea.hbm %s9, %s447
          %s449 = sshll.u32 %s442, 4
          %s450 = int_to_ptr.vmem [resolvable:$true] %s449
          %455 = dma.hbm_to_vmem [thread:$0]  %s448, 2048, %s450, %s439, 128, 128, 8
        $region56: #{tpu_custom_call.1} parent=31 // pred_fallthru
          _
        // Predicated region
        $region57: #{tpu_custom_call.1} parent=31 // pred_check
          %p456 = pneg %p286
        $region58: #{tpu_custom_call.1} parent=31 // pred_check_branch
          %458 = sbr.rel (%p456) target = $region60
        $region59: #{tpu_custom_call.1} parent=31 // pred_region
          %s459 = sand.u32 %s26, 1
          %s460 = scalar_lea.sflag [#allocation13], %s459
          %s461 = sand.u32 %s276, 1
          %s462 = smul.addr %s461, 64
          %s463 = scalar_lea.vmem [#allocation14], %s462
          %s465 = ssub.s32 1024, 1024
          %466 = vsyncadd %s460, %s465
          %s467 = smul.addr %s26, 16
          %s468 = smul.addr %s467, 64
          %s469 = scalar_lea.hbm %s10, %s468
          %s470 = sshll.u32 %s463, 4
          %s471 = int_to_ptr.vmem [resolvable:$true] %s470
          %476 = dma.hbm_to_vmem [thread:$0]  %s469, 1024, %s471, %s460, 64, 64, 4
        $region60: #{tpu_custom_call.1} parent=31 // pred_fallthru
          _
      $region32: #{tpu_custom_call.1} parent=5 // pred_fallthru
        _
      %p477 = scmp.le.s32.totalorder 1, %s26
      %p478 = scmp.lt.s32.totalorder %s26, 3
      %p479 = pnand %p477, %p478
      %p480 = pneg %p479
      // Predicated region
      $region61: #{tpu_custom_call.1} parent=5 // pred_check
        _
      $region62: #{tpu_custom_call.1} parent=5 // pred_check_branch
        %482 = sbr.rel (%p479) target = $region64
      $region63: #{tpu_custom_call.1} parent=5 // pred_region
        %s483 = ssub.s32 %s26, 1
        // Predicated region
        $region65: #{tpu_custom_call.1} parent=63 // pred_check
          %p484 = pneg %p47
        $region66: #{tpu_custom_call.1} parent=63 // pred_check_branch
          %486 = sbr.rel (%p484) target = $region68
        $region67: #{tpu_custom_call.1} parent=63 // pred_region
          %487 = dma.done [#allocation4], 128
        $region68: #{tpu_custom_call.1} parent=63 // pred_fallthru
          _
        // Predicated region
        $region69: #{tpu_custom_call.1} parent=63 // pred_check
          %p488 = pneg %p68
        $region70: #{tpu_custom_call.1} parent=63 // pred_check_branch
          %490 = sbr.rel (%p488) target = $region72
        $region71: #{tpu_custom_call.1} parent=63 // pred_region
          %491 = dma.done [#allocation7], 512
        $region72: #{tpu_custom_call.1} parent=63 // pred_fallthru
          _
        // Predicated region
        $region73: #{tpu_custom_call.1} parent=63 // pred_check
          %p492 = pneg %p89
        $region74: #{tpu_custom_call.1} parent=63 // pred_check_branch
          %494 = sbr.rel (%p492) target = $region76
        $region75: #{tpu_custom_call.1} parent=63 // pred_region
          %495 = dma.done [#allocation7], 512
        $region76: #{tpu_custom_call.1} parent=63 // pred_fallthru
          _
        %s496 = sand.u32 %s31, 1
        %s497 = scalar_lea.sflag [#allocation10], %s496
        %s498 = sand.u32 %s149, 1
        %s499 = smul.addr %s498, 128
        %s500 = scalar_lea.vmem [#allocation9], %s499
        // Predicated region
        $region77: #{tpu_custom_call.1} parent=63 // pred_check
          %p501 = pneg %p162
        $region78: #{tpu_custom_call.1} parent=63 // pred_check_branch
          %503 = sbr.rel (%p501) target = $region80
        $region79: #{tpu_custom_call.1} parent=63 // pred_region
          %504 = dma.done %s497, 2048
        $region80: #{tpu_custom_call.1} parent=63 // pred_fallthru
          _
        %s505 = sand.u32 %s31, 1
        %s506 = scalar_lea.sflag [#allocation10], %s505
        %s507 = sand.u32 %s201, 1
        %s508 = smul.addr %s507, 64
        %s509 = scalar_lea.vmem [#allocation11], %s508
        // Predicated region
        $region81: #{tpu_custom_call.1} parent=63 // pred_check
          %p510 = pneg %p214
        $region82: #{tpu_custom_call.1} parent=63 // pred_check_branch
          %512 = sbr.rel (%p510) target = $region84
        $region83: #{tpu_custom_call.1} parent=63 // pred_region
          %513 = dma.done %s506, 1024
        $region84: #{tpu_custom_call.1} parent=63 // pred_fallthru
          _
        %s514 = sand.u32 %s31, 1
        %s515 = scalar_lea.sflag [#allocation13], %s514
        %s516 = sand.u32 %s253, 1
        %s517 = smul.addr %s516, 128
        %s518 = scalar_lea.vmem [#allocation12], %s517
        // Predicated region
        $region85: #{tpu_custom_call.1} parent=63 // pred_check
          %p519 = pneg %p266
        $region86: #{tpu_custom_call.1} parent=63 // pred_check_branch
          %521 = sbr.rel (%p519) target = $region88
        $region87: #{tpu_custom_call.1} parent=63 // pred_region
          %522 = dma.done %s515, 2048
        $region88: #{tpu_custom_call.1} parent=63 // pred_fallthru
          _
        %s523 = sand.u32 %s31, 1
        %s524 = scalar_lea.sflag [#allocation13], %s523
        %s525 = sand.u32 %s279, 1
        %s526 = smul.addr %s525, 64
        %s527 = scalar_lea.vmem [#allocation14], %s526
        // Predicated region
        $region89: #{tpu_custom_call.1} parent=63 // pred_check
          %p528 = pneg %p292
        $region90: #{tpu_custom_call.1} parent=63 // pred_check_branch
          %530 = sbr.rel (%p528) target = $region92
        $region91: #{tpu_custom_call.1} parent=63 // pred_region
          %531 = dma.done %s524, 1024
        $region92: #{tpu_custom_call.1} parent=63 // pred_fallthru
          _
        %p532 = pneg %p47
        %p533 = pneg %p44
        %p534 = pneg %p68
        %p535 = pneg %p65
        %p536 = pneg %p89
        %p537 = pneg %p86
        %p538 = pneg %p110
        %p539 = pneg %p107
        %p540 = scmp.lt.s32.totalorder %s31, 1
        %s541 = scalar_select %p540, %s31, 1
        %s542 = scalar_lea.vmem %s4, %s541
        %p543 = pneg %p136
        %p544 = pneg %p133
        %s545 = sand.u32 %s31, 1
        %s546 = scalar_lea.sflag [#allocation10], %s545
        %s547 = sand.u32 %s149, 1
        %s548 = smul.addr %s547, 128
        %s549 = scalar_lea.vmem [#allocation9], %s548
        %p550 = pneg %p162
        %p551 = pneg %p159
        %p552 = scmp.lt.s32.totalorder %s31, 1
        %s553 = scalar_select %p552, %s31, 1
        %s554 = smul.addr %s553, 2
        %s555 = scalar_lea.vmem %s6, %s554
        %p556 = pneg %p188
        %p557 = pneg %p185
        %s558 = sand.u32 %s31, 1
        %s559 = scalar_lea.sflag [#allocation10], %s558
        %s560 = sand.u32 %s201, 1
        %s561 = smul.addr %s560, 64
        %s562 = scalar_lea.vmem [#allocation11], %s561
        %p563 = pneg %p214
        %p564 = pneg %p211
        %p565 = scmp.lt.s32.totalorder %s31, 1
        %s566 = scalar_select %p565, %s31, 1
        %s567 = scalar_lea.vmem %s8, %s566
        %p568 = pneg %p240
        %p569 = pneg %p237
        %s570 = sand.u32 %s31, 1
        %s571 = scalar_lea.sflag [#allocation13], %s570
        %s572 = sand.u32 %s253, 1
        %s573 = smul.addr %s572, 128
        %s574 = scalar_lea.vmem [#allocation12], %s573
        %p575 = pneg %p266
        %p576 = pneg %p263
        %s577 = sand.u32 %s31, 1
        %s578 = scalar_lea.sflag [#allocation13], %s577
        %s579 = sand.u32 %s279, 1
        %s580 = smul.addr %s579, 64
        %s581 = scalar_lea.vmem [#allocation14], %s580
        %p582 = pneg %p292
        %p583 = pneg %p289
        %p584 = pneg %p313
        %p585 = pneg %p310
        %p586 = scmp.lt.s32.totalorder %s31, 1
        %s587 = scalar_select %p586, %s31, 1
        %s588 = scalar_lea.vmem %s4, %s587
        %p589 = scmp.lt.s32.totalorder %s31, 1
        %s590 = scalar_select %p589, %s31, 1
        %s591 = smul.addr %s590, 2
        %s592 = scalar_lea.vmem %s6, %s591
        %p593 = scmp.lt.s32.totalorder %s31, 1
        %s594 = scalar_select %p593, %s31, 1
        %s595 = scalar_lea.vmem %s8, %s594
        %p597 = scmp.eq.s32.totalorder %s31, 0
        // Predicated region
        $region93: #{tpu_custom_call.1} parent=63 // pred_check
          %p598 = pneg %p597
        $region94: #{tpu_custom_call.1} parent=63 // pred_check_branch
          %600 = sbr.rel (%p598) target = $region96
        $region95: #{tpu_custom_call.1} parent=63 // pred_region
          %v601 = vld [vmem:[#allocation3] sm:$0xf]
          %v602 = vld [vmem:[#allocation3 + $0x4] sm:$0xf]
          %v603 = vunpack.c.l.bf16 %v601
          %v604 = vunpack.c.l.bf16 %v602
          %605 = vst [vmem:[#allocation2] sm:$0xff] %v603
          %606 = vst [vmem:[#allocation2 + $0x8] sm:$0xff] %v604
        $region96: #{tpu_custom_call.1} parent=63 // pred_fallthru
          _
        %v607 = vld [vmem:[#allocation2] sm:$0xff]
        %v608 = vld [vmem:[#allocation2 + $0x8] sm:$0xff]
        %v609 = vmul.f32 %v607, %v607
        %v610 = vmul.f32 %v608, %v608
        %611 = vadd.xlane.f32.xlu0 %v609
        %v612 = vpop.xlane.xlu0 %611
        %613 = vadd.xlane.f32.xlu0 %v610
        %v614 = vpop.xlane.xlu0 %613
        %v615 = vrcp.pop 128.0
        %v616 = vmul.f32 %v612, %v615
        %v617 = vmul.f32 %v614, %v615
        %v618 = vadd.f32 %v616, 1e-05
        %v619 = vadd.f32 %v617, 1e-05
        %v620 = vrsqrt.pop %v618
        %v621 = vrsqrt.pop %v619
        %v622 = vmul.f32 %v607, %v620
        %v623 = vmul.f32 %v608, %v621
        %v624 = vld [vmem:[%s588] sm:$0x1]
        %v626 = vlaneseq
        %v627 = vshrl.u32 %v626, 7
        %v628 = vsub.s32 0, %v627
        %v629 = vrot.slane %v624, %v628
        %v631 = vmul.f32 %v622, %v629
        %v632 = vmul.f32 %v623, %v629
        %v633 = vpack.c.bf16 %v632, %v631
        %v634 = vld [vmem:[%s500] sm:$0xff]
        %v635 = vld [vmem:[%s500 + $0x8] sm:$0xff]
        %v636 = vld [vmem:[%s500 + $0x10] sm:$0xff]
        %v637 = vld [vmem:[%s500 + $0x18] sm:$0xff]
        %v638 = vld [vmem:[%s500 + $0x20] sm:$0xff]
        %v639 = vld [vmem:[%s500 + $0x28] sm:$0xff]
        %v640 = vld [vmem:[%s500 + $0x30] sm:$0xff]
        %v641 = vld [vmem:[%s500 + $0x38] sm:$0xff]
        %v642 = vld [vmem:[%s500 + $0x40] sm:$0xff]
        %v643 = vld [vmem:[%s500 + $0x48] sm:$0xff]
        %v644 = vld [vmem:[%s500 + $0x50] sm:$0xff]
        %v645 = vld [vmem:[%s500 + $0x58] sm:$0xff]
        %v646 = vld [vmem:[%s500 + $0x60] sm:$0xff]
        %v647 = vld [vmem:[%s500 + $0x68] sm:$0xff]
        %v648 = vld [vmem:[%s500 + $0x70] sm:$0xff]
        %v649 = vld [vmem:[%s500 + $0x78] sm:$0xff]
        %v650 = vld [vmem:[%s592] sm:$0x3]
        %v652 = vlaneseq
        %v653 = vshrl.u32 %v652, 7
        %v654 = vsub.s32 0, %v653
        %v655 = vrot.slane %v650, %v654
        %v656 = vlaneseq
        %v657 = vshrl.u32 %v656, 7
        %v658 = vsub.s32 1, %v657
        %v659 = vrot.slane %v650, %v658
        %v678 = vunpack.c.l.b16 %v634
        %v679 = vunpack.c.h.b16 %v634
        %v680 = vunpack.c.l.b16 %v635
        %v681 = vunpack.c.h.b16 %v635
        %v682 = vunpack.c.l.b16 %v636
        %v683 = vunpack.c.h.b16 %v636
        %v684 = vunpack.c.l.b16 %v637
        %v685 = vunpack.c.h.b16 %v637
        %v686 = vunpack.c.l.b16 %v638
        %v687 = vunpack.c.h.b16 %v638
        %v688 = vunpack.c.l.b16 %v639
        %v689 = vunpack.c.h.b16 %v639
        %v690 = vunpack.c.l.b16 %v640
        %v691 = vunpack.c.h.b16 %v640
        %v692 = vunpack.c.l.b16 %v641
        %v693 = vunpack.c.h.b16 %v641
        %v694 = vunpack.c.l.b16 %v642
        %v695 = vunpack.c.h.b16 %v642
        %v696 = vunpack.c.l.b16 %v643
        %v697 = vunpack.c.h.b16 %v643
        %v698 = vunpack.c.l.b16 %v644
        %v699 = vunpack.c.h.b16 %v644
        %v700 = vunpack.c.l.b16 %v645
        %v701 = vunpack.c.h.b16 %v645
        %v702 = vunpack.c.l.b16 %v646
        %v703 = vunpack.c.h.b16 %v646
        %v704 = vunpack.c.l.b16 %v647
        %v705 = vunpack.c.h.b16 %v647
        %v706 = vunpack.c.l.b16 %v648
        %v707 = vunpack.c.h.b16 %v648
        %v708 = vunpack.c.l.b16 %v649
        %v709 = vunpack.c.h.b16 %v649
        %v710 = vpack.c.b16 %v680, %v678
        %v711 = vpack.c.b16 %v681, %v679
        %v712 = vpack.c.b16 %v684, %v682
        %v713 = vpack.c.b16 %v685, %v683
        %v714 = vpack.c.b16 %v688, %v686
        %v715 = vpack.c.b16 %v689, %v687
        %v716 = vpack.c.b16 %v692, %v690
        %v717 = vpack.c.b16 %v693, %v691
        %v718 = vpack.c.b16 %v696, %v694
        %v719 = vpack.c.b16 %v697, %v695
        %v720 = vpack.c.b16 %v700, %v698
        %v721 = vpack.c.b16 %v701, %v699
        %v722 = vpack.c.b16 %v704, %v702
        %v723 = vpack.c.b16 %v705, %v703
        %v724 = vpack.c.b16 %v708, %v706
        %v725 = vpack.c.b16 %v709, %v707
        %742 = vmatprep.subr.bf16.mxu0 %v711
        %743 = vmatpush1.bf16.msra.mxu0 %v710
        %744 = vmatprep.subr.bf16.mxu0 %v713
        %745 = vmatpush1.bf16.msra.mxu0 %v712
        %746 = vmatprep.subr.bf16.mxu0 %v715
        %747 = vmatpush1.bf16.msra.mxu0 %v714
        %748 = vmatprep.subr.bf16.mxu0 %v717
        %749 = vmatpush1.bf16.msra.mxu0 %v716
        %750 = vmatprep.subr.bf16.mxu0 %v719
        %751 = vmatpush1.bf16.msra.mxu0 %v718
        %752 = vmatprep.subr.bf16.mxu0 %v721
        %753 = vmatpush1.bf16.msra.mxu0 %v720
        %754 = vmatprep.subr.bf16.mxu0 %v723
        %755 = vmatpush1.bf16.msra.mxu0 %v722
        %756 = vmatprep.subr.bf16.mxu0 %v725
        %757 = vmatpush1.bf16.msra.mxu0 %v724
        %758 = vmatprep.subr.bf16.mxu0 0
        %759 = vmatpush1.bf16.msra.mxu0 0
        %760 = vmatprep.subr.bf16.mxu0 0
        %761 = vmatpush1.bf16.msra.mxu0 0
        %762 = vmatprep.subr.bf16.mxu0 0
        %763 = vmatpush1.bf16.msra.mxu0 0
        %764 = vmatprep.subr.bf16.mxu0 0
        %765 = vmatpush1.bf16.msra.mxu0 0
        %766 = vmatprep.subr.bf16.mxu0 0
        %767 = vmatpush1.bf16.msra.mxu0 0
        %768 = vmatprep.subr.bf16.mxu0 0
        %769 = vmatpush1.bf16.msra.mxu0 0
        %770 = vmatprep.subr.bf16.mxu0 0
        %771 = vmatpush1.bf16.msra.mxu0 0
        %772 = vmatprep.subr.bf16.mxu0 0
        %773 = vmatpush1.bf16.msra.mxu0 0
        %774 = vmatprep.mubr.bf16.mxu0 0
        %775 = vmatmul.mubr.bf16.gmra.mrb[0].mxu0 %v633
        %v776 = vpop.f32.mrb[0].mxu0
        %v777 = vadd.f32 %v655, %v776
        %v778 = vpop.f32.mrb[0].mxu0
        %v779 = vadd.f32 %v659, %v778
        %v780 = vpop.f32.mrb[0].mxu0
        %v781 = vadd.f32 %v655, %v780
        %v782 = vpop.f32.mrb[0].mxu0
        %v783 = vadd.f32 %v659, %v782
        %784 = vdwg.mxu0
        %785 = vrot.lane.b32.xlu0 %v777, 127
        %v786 = vpop.permute.xlu0 %785
        %787 = vrot.lane.b32.xlu0 %v781, 127
        %v788 = vpop.permute.xlu0 %787
        %789 = vrot.lane.b32.xlu0 %v779, 127
        %v790 = vpop.permute.xlu0 %789
        %791 = vrot.lane.b32.xlu0 %v783, 127
        %v792 = vpop.permute.xlu0 %791
        %v793 = vlaneseq
        %v794 = vand.u32 %v793, 127
        %vm795 = vcmp.lt.s32.totalorder %v794, 127
        %v796 = vsel %vm795, %v786, %v790
        %v797 = vsel %vm795, %v788, %v792
        %v798 = vsel %vm795, %v790, %v786
        %v799 = vsel %vm795, %v792, %v788
        %800 = vrot.lane.b32.xlu0 %v777, 1
        %v801 = vpop.permute.xlu0 %800
        %802 = vrot.lane.b32.xlu0 %v781, 1
        %v803 = vpop.permute.xlu0 %802
        %804 = vrot.lane.b32.xlu0 %v779, 1
        %v805 = vpop.permute.xlu0 %804
        %806 = vrot.lane.b32.xlu0 %v783, 1
        %v807 = vpop.permute.xlu0 %806
        %vm808 = vcmp.lt.s32.totalorder %v794, 1
        %v809 = vsel %vm808, %v801, %v805
        %v810 = vsel %vm808, %v803, %v807
        %v811 = vsel %vm808, %v805, %v801
        %v812 = vsel %vm808, %v807, %v803
        %v813 = vadd.s32 %v794, 128
        %vm814 = vcmp.lt.s32.totalorder %v794, 0
        %v815 = vsub.s32 0, %v794
        %v816 = vsel %vm814, %v815, %v794
        %v817 = vshrl.u32 %v816, 1
        %v818 = vand.u32 %v816, 1
        %v819 = vsub.s32 0, %v818
        %v820 = vsel %vm814, %v819, %v818
        %vm821 = vcmp.lt.s32.totalorder %v813, 0
        %v822 = vsub.s32 0, %v813
        %v823 = vsel %vm821, %v822, %v813
        %v824 = vshrl.u32 %v823, 1
        %v825 = vand.u32 %v823, 1
        %v826 = vsub.s32 0, %v825
        %v827 = vsel %vm821, %v826, %v825
        %vm828 = vcmp.ne.s32.totalorder %v820, 0
        %vm829 = vcmp.ne.s32.totalorder %v827, 0
        %vm830 = vcmp.lt.s32.totalorder %v820, 0
        %vm831 = vcmp.lt.s32.totalorder %v827, 0
        %vm832 = vmand %vm830, %vm828
        %vm833 = vmand %vm831, %vm829
        %v834 = vadd.s32 %v820, 2
        %v835 = vadd.s32 %v827, 2
        %v836 = vsel %vm832, %v834, %v820
        %v837 = vsel %vm833, %v835, %v827
        %vm838 = vcmp.eq.s32.totalorder %v836, 0
        %vm839 = vcmp.eq.s32.totalorder %v837, 0
        %v840 = vsel %vm838, %v796, %v811
        %v841 = vsel %vm839, %v798, %v809
        %v842 = vsel %vm838, %v797, %v812
        %v843 = vsel %vm839, %v799, %v810
        %v844 = vld [vmem:[#allocation6] sm:$0xff]
        %v845 = vld [vmem:[#allocation6 + $0x8] sm:$0xff]
        %v846 = vld [vmem:[#allocation6 + $0x10] sm:$0xff]
        %v847 = vld [vmem:[#allocation6 + $0x18] sm:$0xff]
        %v848 = vmul.f32 %v777, %v844
        %v849 = vmul.f32 %v779, %v845
        %v850 = vmul.f32 %v781, %v846
        %v851 = vmul.f32 %v783, %v847
        %v852 = vld [vmem:[#allocation8] sm:$0xff]
        %v853 = vld [vmem:[#allocation8 + $0x8] sm:$0xff]
        %v854 = vld [vmem:[#allocation8 + $0x10] sm:$0xff]
        %v855 = vld [vmem:[#allocation8 + $0x18] sm:$0xff]
        %v856 = vmul.f32 %v840, %v852
        %v857 = vmul.f32 %v841, %v853
        %v858 = vmul.f32 %v842, %v854
        %v859 = vmul.f32 %v843, %v855
        %v860 = vadd.f32 %v848, %v856
        %v861 = vadd.f32 %v849, %v857
        %v862 = vadd.f32 %v850, %v858
        %v863 = vadd.f32 %v851, %v859
        %v864 = vlaneseq
        %v865 = vshrl.u32 %v864, 7
        %v866 = vadd.s32 %v865, 8
        %vm867 = vcmp.le.s32.totalorder %v794, %v865
        %vm868 = vcmp.le.s32.totalorder %v794, %v866
        %v869 = vpack.c.bf16 %v862, %v860
        %v870 = vpack.c.bf16 %v863, %v861
        %v871 = vpack.c.bf16 %v783, %v779
        %vm872 = vcmask 261120
        %v874 = vsel %vm872, %v869, 0
        %v877 = vsel %vm872, %v870, 0
        %879 = vmatprep.subr.bf16.mxu0 0
        %880 = vmatpush1.bf16.xpose.msra.mxu0 %v877
        %881 = vmatprep.subr.bf16.mxu0 0
        %882 = vmatpush1.bf16.xpose.msra.mxu0 0
        %883 = vmatprep.subr.bf16.mxu0 0
        %884 = vmatpush1.bf16.xpose.msra.mxu0 0
        %885 = vmatprep.subr.bf16.mxu0 0
        %886 = vmatpush1.bf16.xpose.msra.mxu0 0
        %887 = vmatprep.subr.bf16.mxu0 0
        %888 = vmatpush1.bf16.xpose.msra.mxu0 0
        %889 = vmatprep.subr.bf16.mxu0 0
        %890 = vmatpush1.bf16.xpose.msra.mxu0 0
        %891 = vmatprep.subr.bf16.mxu0 0
        %892 = vmatpush1.bf16.xpose.msra.mxu0 0
        %893 = vmatprep.subr.bf16.mxu0 0
        %894 = vmatpush1.bf16.xpose.msra.mxu0 0
        %895 = vmatprep.subr.bf16.mxu0 0
        %896 = vmatpush1.bf16.xpose.msra.mxu0 0
        %897 = vmatprep.subr.bf16.mxu0 0
        %898 = vmatpush1.bf16.xpose.msra.mxu0 0
        %899 = vmatprep.subr.bf16.mxu0 0
        %900 = vmatpush1.bf16.xpose.msra.mxu0 0
        %901 = vmatprep.subr.bf16.mxu0 0
        %902 = vmatpush1.bf16.xpose.msra.mxu0 0
        %903 = vmatprep.subr.bf16.mxu0 0
        %904 = vmatpush1.bf16.xpose.msra.mxu0 0
        %905 = vmatprep.subr.bf16.mxu0 0
        %906 = vmatpush1.bf16.xpose.msra.mxu0 0
        %907 = vmatprep.subr.bf16.mxu0 0
        %908 = vmatpush1.bf16.xpose.msra.mxu0 0
        %909 = vmatprep.subr.bf16.mxu0 0
        %910 = vmatpush1.bf16.xpose.msra.mxu0 0
        %911 = vmatprep.mubr.bf16.mxu0 0
        %912 = vmatmul.mubr.bf16.gmra.mrb[0].mxu0 %v874
        %v913 = vpop.f32.mrb[0].mxu0
        %v914 = vadd.f32 0.0, %v913
        %v915 = vpop.f32.mrb[0].mxu0
        %v916 = vpop.f32.mrb[0].mxu0
        %v917 = vadd.f32 0.0, %v916
        %v918 = vpop.f32.mrb[0].mxu0
        %919 = vdwg.mxu0
        %v920 = vsel %vm867, %v914, -1e+30
        %v921 = vsel %vm868, %v917, -1e+30
        %vm922 = vcmask 130048
        %v923 = vsel %vm922, %v920, -inf
        %924 = vmax.xlane.f32.xlu0 %v923
        %v925 = vpop.xlane.xlu0 %924
        %v926 = vsel %vm922, %v921, -inf
        %927 = vmax.xlane.f32.xlu0 %v926
        %v928 = vpop.xlane.xlu0 %927
        %v929 = vsub.f32 %v920, %v925
        %v930 = vsub.f32 %v921, %v928
        %v931 = vmul.f32 %v929, 1.442695
        %v932 = vpow.pop %v931
        %v933 = vmul.f32 %v930, 1.442695
        %v934 = vpow.pop %v933
        %v935 = vsel %vm922, %v932, 0.0
        %936 = vadd.xlane.f32.xlu0 %v935
        %v937 = vpop.xlane.xlu0 %936
        %v938 = vsel %vm922, %v934, 0.0
        %939 = vadd.xlane.f32.xlu0 %v938
        %v940 = vpop.xlane.xlu0 %939
        %v941 = vpack.c.bf16 %v934, %v932
        %943 = vrot.lane.b32.xlu0 %v871, 64
        %v944 = vpop.permute.xlu0 %943
        %v947 = vsel %vm922, %v941, 0
        %949 = vmatprep.subr.bf16.mxu0 0
        %950 = vmatpush1.bf16.msra.mxu0 %v944
        %951 = vmatprep.subr.bf16.mxu0 0
        %952 = vmatpush1.bf16.msra.mxu0 0
        %953 = vmatprep.subr.bf16.mxu0 0
        %954 = vmatpush1.bf16.msra.mxu0 0
        %955 = vmatprep.subr.bf16.mxu0 0
        %956 = vmatpush1.bf16.msra.mxu0 0
        %957 = vmatprep.subr.bf16.mxu0 0
        %958 = vmatpush1.bf16.msra.mxu0 0
        %959 = vmatprep.subr.bf16.mxu0 0
        %960 = vmatpush1.bf16.msra.mxu0 0
        %961 = vmatprep.subr.bf16.mxu0 0
        %962 = vmatpush1.bf16.msra.mxu0 0
        %963 = vmatprep.subr.bf16.mxu0 0
        %964 = vmatpush1.bf16.msra.mxu0 0
        %965 = vmatprep.subr.bf16.mxu0 0
        %966 = vmatpush1.bf16.msra.mxu0 0
        %967 = vmatprep.subr.bf16.mxu0 0
        %968 = vmatpush1.bf16.msra.mxu0 0
        %969 = vmatprep.subr.bf16.mxu0 0
        %970 = vmatpush1.bf16.msra.mxu0 0
        %971 = vmatprep.subr.bf16.mxu0 0
        %972 = vmatpush1.bf16.msra.mxu0 0
        %973 = vmatprep.subr.bf16.mxu0 0
        %974 = vmatpush1.bf16.msra.mxu0 0
        %975 = vmatprep.subr.bf16.mxu0 0
        %976 = vmatpush1.bf16.msra.mxu0 0
        %977 = vmatprep.subr.bf16.mxu0 0
        %978 = vmatpush1.bf16.msra.mxu0 0
        %979 = vmatprep.subr.bf16.mxu0 0
        %980 = vmatpush1.bf16.msra.mxu0 0
        %981 = vmatprep.mubr.bf16.mxu0 0
        %982 = vmatmul.mubr.bf16.gmra.mrb[0].mxu0 %v947
        %v983 = vpop.f32.mrb[0].mxu0
        %v984 = vadd.f32 0.0, %v983
        %v985 = vpop.f32.mrb[0].mxu0
        %v986 = vpop.f32.mrb[0].mxu0
        %v987 = vadd.f32 0.0, %v986
        %v988 = vpop.f32.mrb[0].mxu0
        %989 = vdwg.mxu0
        %v990 = vrcp.pop %v937
        %v991 = vrcp.pop %v940
        %v992 = vmul.f32 %v984, %v990
        %v993 = vmul.f32 %v987, %v991
        %995 = vrot.lane.b32.xlu0 %v869, 96
        %v996 = vpop.permute.xlu0 %995
        %v998 = vsel %vm872, %v996, 0
        %1000 = vmatprep.subr.bf16.mxu0 0
        %1001 = vmatpush1.bf16.xpose.msra.mxu0 %v877
        %1002 = vmatprep.subr.bf16.mxu0 0
        %1003 = vmatpush1.bf16.xpose.msra.mxu0 0
        %1004 = vmatprep.subr.bf16.mxu0 0
        %1005 = vmatpush1.bf16.xpose.msra.mxu0 0
        %1006 = vmatprep.subr.bf16.mxu0 0
        %1007 = vmatpush1.bf16.xpose.msra.mxu0 0
        %1008 = vmatprep.subr.bf16.mxu0 0
        %1009 = vmatpush1.bf16.xpose.msra.mxu0 0
        %1010 = vmatprep.subr.bf16.mxu0 0
        %1011 = vmatpush1.bf16.xpose.msra.mxu0 0
        %1012 = vmatprep.subr.bf16.mxu0 0
        %1013 = vmatpush1.bf16.xpose.msra.mxu0 0
        %1014 = vmatprep.subr.bf16.mxu0 0
        %1015 = vmatpush1.bf16.xpose.msra.mxu0 0
        %1016 = vmatprep.subr.bf16.mxu0 0
        %1017 = vmatpush1.bf16.xpose.msra.mxu0 0
        %1018 = vmatprep.subr.bf16.mxu0 0
        %1019 = vmatpush1.bf16.xpose.msra.mxu0 0
        %1020 = vmatprep.subr.bf16.mxu0 0
        %1021 = vmatpush1.bf16.xpose.msra.mxu0 0
        %1022 = vmatprep.subr.bf16.mxu0 0
        %1023 = vmatpush1.bf16.xpose.msra.mxu0 0
        %1024 = vmatprep.subr.bf16.mxu0 0
        %1025 = vmatpush1.bf16.xpose.msra.mxu0 0
        %1026 = vmatprep.subr.bf16.mxu0 0
        %1027 = vmatpush1.bf16.xpose.msra.mxu0 0
        %1028 = vmatprep.subr.bf16.mxu0 0
        %1029 = vmatpush1.bf16.xpose.msra.mxu0 0
        %1030 = vmatprep.subr.bf16.mxu0 0
        %1031 = vmatpush1.bf16.xpose.msra.mxu0 0
        %1032 = vmatprep.mubr.bf16.mxu0 0
        %1033 = vmatmul.mubr.bf16.gmra.mrb[0].mxu0 %v998
        %v1034 = vpop.f32.mrb[0].mxu0
        %v1035 = vadd.f32 0.0, %v1034
        %v1036 = vpop.f32.mrb[0].mxu0
        %v1037 = vpop.f32.mrb[0].mxu0
        %v1038 = vadd.f32 0.0, %v1037
        %v1039 = vpop.f32.mrb[0].mxu0
        %1040 = vdwg.mxu0
        %v1041 = vsel %vm867, %v1035, -1e+30
        %v1042 = vsel %vm868, %v1038, -1e+30
        %v1043 = vsel %vm922, %v1041, -inf
        %1044 = vmax.xlane.f32.xlu0 %v1043
        %v1045 = vpop.xlane.xlu0 %1044
        %v1046 = vsel %vm922, %v1042, -inf
        %1047 = vmax.xlane.f32.xlu0 %v1046
        %v1048 = vpop.xlane.xlu0 %1047
        %v1049 = vsub.f32 %v1041, %v1045
        %v1050 = vsub.f32 %v1042, %v1048
        %v1051 = vmul.f32 %v1049, 1.442695
        %v1052 = vpow.pop %v1051
        %v1053 = vmul.f32 %v1050, 1.442695
        %v1054 = vpow.pop %v1053
        %v1055 = vsel %vm922, %v1052, 0.0
        %1056 = vadd.xlane.f32.xlu0 %v1055
        %v1057 = vpop.xlane.xlu0 %1056
        %v1058 = vsel %vm922, %v1054, 0.0
        %1059 = vadd.xlane.f32.xlu0 %v1058
        %v1060 = vpop.xlane.xlu0 %1059
        %v1061 = vpack.c.bf16 %v1054, %v1052
        %v1063 = vsel %vm922, %v1061, 0
        %1065 = vmatprep.subr.bf16.mxu0 0
        %1066 = vmatpush1.bf16.msra.mxu0 %v944
        %1067 = vmatprep.subr.bf16.mxu0 0
        %1068 = vmatpush1.bf16.msra.mxu0 0
        %1069 = vmatprep.subr.bf16.mxu0 0
        %1070 = vmatpush1.bf16.msra.mxu0 0
        %1071 = vmatprep.subr.bf16.mxu0 0
        %1072 = vmatpush1.bf16.msra.mxu0 0
        %1073 = vmatprep.subr.bf16.mxu0 0
        %1074 = vmatpush1.bf16.msra.mxu0 0
        %1075 = vmatprep.subr.bf16.mxu0 0
        %1076 = vmatpush1.bf16.msra.mxu0 0
        %1077 = vmatprep.subr.bf16.mxu0 0
        %1078 = vmatpush1.bf16.msra.mxu0 0
        %1079 = vmatprep.subr.bf16.mxu0 0
        %1080 = vmatpush1.bf16.msra.mxu0 0
        %1081 = vmatprep.subr.bf16.mxu0 0
        %1082 = vmatpush1.bf16.msra.mxu0 0
        %1083 = vmatprep.subr.bf16.mxu0 0
        %1084 = vmatpush1.bf16.msra.mxu0 0
        %1085 = vmatprep.subr.bf16.mxu0 0
        %1086 = vmatpush1.bf16.msra.mxu0 0
        %1087 = vmatprep.subr.bf16.mxu0 0
        %1088 = vmatpush1.bf16.msra.mxu0 0
        %1089 = vmatprep.subr.bf16.mxu0 0
        %1090 = vmatpush1.bf16.msra.mxu0 0
        %1091 = vmatprep.subr.bf16.mxu0 0
        %1092 = vmatpush1.bf16.msra.mxu0 0
        %1093 = vmatprep.subr.bf16.mxu0 0
        %1094 = vmatpush1.bf16.msra.mxu0 0
        %1095 = vmatprep.subr.bf16.mxu0 0
        %1096 = vmatpush1.bf16.msra.mxu0 0
        %1097 = vmatprep.mubr.bf16.mxu0 0
        %1098 = vmatmul.mubr.bf16.gmra.mrb[0].mxu0 %v1063
        %v1099 = vpop.f32.mrb[0].mxu0
        %v1100 = vadd.f32 0.0, %v1099
        %v1101 = vpop.f32.mrb[0].mxu0
        %v1102 = vpop.f32.mrb[0].mxu0
        %v1103 = vadd.f32 0.0, %v1102
        %v1104 = vpop.f32.mrb[0].mxu0
        %1105 = vdwg.mxu0
        %v1106 = vrcp.pop %v1057
        %v1107 = vrcp.pop %v1060
        %v1108 = vmul.f32 %v1100, %v1106
        %v1109 = vmul.f32 %v1103, %v1107
        %1110 = vrot.lane.b32.xlu0 %v869, 64
        %v1111 = vpop.permute.xlu0 %1110
        %1113 = vrot.lane.b32.xlu0 %v870, 96
        %v1114 = vpop.permute.xlu0 %1113
        %v1116 = vsel %vm872, %v1111, 0
        %v1119 = vsel %vm872, %v1114, 0
        %1121 = vmatprep.subr.bf16.mxu0 0
        %1122 = vmatpush1.bf16.xpose.msra.mxu0 %v1119
        %1123 = vmatprep.subr.bf16.mxu0 0
        %1124 = vmatpush1.bf16.xpose.msra.mxu0 0
        %1125 = vmatprep.subr.bf16.mxu0 0
        %1126 = vmatpush1.bf16.xpose.msra.mxu0 0
        %1127 = vmatprep.subr.bf16.mxu0 0
        %1128 = vmatpush1.bf16.xpose.msra.mxu0 0
        %1129 = vmatprep.subr.bf16.mxu0 0
        %1130 = vmatpush1.bf16.xpose.msra.mxu0 0
        %1131 = vmatprep.subr.bf16.mxu0 0
        %1132 = vmatpush1.bf16.xpose.msra.mxu0 0
        %1133 = vmatprep.subr.bf16.mxu0 0
        %1134 = vmatpush1.bf16.xpose.msra.mxu0 0
        %1135 = vmatprep.subr.bf16.mxu0 0
        %1136 = vmatpush1.bf16.xpose.msra.mxu0 0
        %1137 = vmatprep.subr.bf16.mxu0 0
        %1138 = vmatpush1.bf16.xpose.msra.mxu0 0
        %1139 = vmatprep.subr.bf16.mxu0 0
        %1140 = vmatpush1.bf16.xpose.msra.mxu0 0
        %1141 = vmatprep.subr.bf16.mxu0 0
        %1142 = vmatpush1.bf16.xpose.msra.mxu0 0
        %1143 = vmatprep.subr.bf16.mxu0 0
        %1144 = vmatpush1.bf16.xpose.msra.mxu0 0
        %1145 = vmatprep.subr.bf16.mxu0 0
        %1146 = vmatpush1.bf16.xpose.msra.mxu0 0
        %1147 = vmatprep.subr.bf16.mxu0 0
        %1148 = vmatpush1.bf16.xpose.msra.mxu0 0
        %1149 = vmatprep.subr.bf16.mxu0 0
        %1150 = vmatpush1.bf16.xpose.msra.mxu0 0
        %1151 = vmatprep.subr.bf16.mxu0 0
        %1152 = vmatpush1.bf16.xpose.msra.mxu0 0
        %1153 = vmatprep.mubr.bf16.mxu0 0
        %1154 = vmatmul.mubr.bf16.gmra.mrb[0].mxu0 %v1116
        %v1155 = vpop.f32.mrb[0].mxu0
        %v1156 = vadd.f32 0.0, %v1155
        %v1157 = vpop.f32.mrb[0].mxu0
        %v1158 = vpop.f32.mrb[0].mxu0
        %v1159 = vadd.f32 0.0, %v1158
        %v1160 = vpop.f32.mrb[0].mxu0
        %1161 = vdwg.mxu0
        %v1162 = vsel %vm867, %v1156, -1e+30
        %v1163 = vsel %vm868, %v1159, -1e+30
        %v1164 = vsel %vm922, %v1162, -inf
        %1165 = vmax.xlane.f32.xlu0 %v1164
        %v1166 = vpop.xlane.xlu0 %1165
        %v1167 = vsel %vm922, %v1163, -inf
        %1168 = vmax.xlane.f32.xlu0 %v1167
        %v1169 = vpop.xlane.xlu0 %1168
        %v1170 = vsub.f32 %v1162, %v1166
        %v1171 = vsub.f32 %v1163, %v1169
        %v1172 = vmul.f32 %v1170, 1.442695
        %v1173 = vpow.pop %v1172
        %v1174 = vmul.f32 %v1171, 1.442695
        %v1175 = vpow.pop %v1174
        %v1176 = vsel %vm922, %v1173, 0.0
        %1177 = vadd.xlane.f32.xlu0 %v1176
        %v1178 = vpop.xlane.xlu0 %1177
        %v1179 = vsel %vm922, %v1175, 0.0
        %1180 = vadd.xlane.f32.xlu0 %v1179
        %v1181 = vpop.xlane.xlu0 %1180
        %v1182 = vpack.c.bf16 %v1175, %v1173
        %1183 = vrot.lane.b32.xlu0 %v871, 32
        %v1184 = vpop.permute.xlu0 %1183
        %v1187 = vsel %vm922, %v1182, 0
        %1189 = vmatprep.subr.bf16.mxu0 0
        %1190 = vmatpush1.bf16.msra.mxu0 %v1184
        %1191 = vmatprep.subr.bf16.mxu0 0
        %1192 = vmatpush1.bf16.msra.mxu0 0
        %1193 = vmatprep.subr.bf16.mxu0 0
        %1194 = vmatpush1.bf16.msra.mxu0 0
        %1195 = vmatprep.subr.bf16.mxu0 0
        %1196 = vmatpush1.bf16.msra.mxu0 0
        %1197 = vmatprep.subr.bf16.mxu0 0
        %1198 = vmatpush1.bf16.msra.mxu0 0
        %1199 = vmatprep.subr.bf16.mxu0 0
        %1200 = vmatpush1.bf16.msra.mxu0 0
        %1201 = vmatprep.subr.bf16.mxu0 0
        %1202 = vmatpush1.bf16.msra.mxu0 0
        %1203 = vmatprep.subr.bf16.mxu0 0
        %1204 = vmatpush1.bf16.msra.mxu0 0
        %1205 = vmatprep.subr.bf16.mxu0 0
        %1206 = vmatpush1.bf16.msra.mxu0 0
        %1207 = vmatprep.subr.bf16.mxu0 0
        %1208 = vmatpush1.bf16.msra.mxu0 0
        %1209 = vmatprep.subr.bf16.mxu0 0
        %1210 = vmatpush1.bf16.msra.mxu0 0
        %1211 = vmatprep.subr.bf16.mxu0 0
        %1212 = vmatpush1.bf16.msra.mxu0 0
        %1213 = vmatprep.subr.bf16.mxu0 0
        %1214 = vmatpush1.bf16.msra.mxu0 0
        %1215 = vmatprep.subr.bf16.mxu0 0
        %1216 = vmatpush1.bf16.msra.mxu0 0
        %1217 = vmatprep.subr.bf16.mxu0 0
        %1218 = vmatpush1.bf16.msra.mxu0 0
        %1219 = vmatprep.subr.bf16.mxu0 0
        %1220 = vmatpush1.bf16.msra.mxu0 0
        %1221 = vmatprep.mubr.bf16.mxu0 0
        %1222 = vmatmul.mubr.bf16.gmra.mrb[0].mxu0 %v1187
        %v1223 = vpop.f32.mrb[0].mxu0
        %v1224 = vadd.f32 0.0, %v1223
        %v1225 = vpop.f32.mrb[0].mxu0
        %v1226 = vpop.f32.mrb[0].mxu0
        %v1227 = vadd.f32 0.0, %v1226
        %v1228 = vpop.f32.mrb[0].mxu0
        %1229 = vdwg.mxu0
        %v1230 = vrcp.pop %v1178
        %v1231 = vrcp.pop %v1181
        %v1232 = vmul.f32 %v1224, %v1230
        %v1233 = vmul.f32 %v1227, %v1231
        %1234 = vrot.lane.b32.xlu0 %v869, 32
        %v1235 = vpop.permute.xlu0 %1234
        %v1237 = vsel %vm872, %v1235, 0
        %1239 = vmatprep.subr.bf16.mxu0 0
        %1240 = vmatpush1.bf16.xpose.msra.mxu0 %v1119
        %1241 = vmatprep.subr.bf16.mxu0 0
        %1242 = vmatpush1.bf16.xpose.msra.mxu0 0
        %1243 = vmatprep.subr.bf16.mxu0 0
        %1244 = vmatpush1.bf16.xpose.msra.mxu0 0
        %1245 = vmatprep.subr.bf16.mxu0 0
        %1246 = vmatpush1.bf16.xpose.msra.mxu0 0
        %1247 = vmatprep.subr.bf16.mxu0 0
        %1248 = vmatpush1.bf16.xpose.msra.mxu0 0
        %1249 = vmatprep.subr.bf16.mxu0 0
        %1250 = vmatpush1.bf16.xpose.msra.mxu0 0
        %1251 = vmatprep.subr.bf16.mxu0 0
        %1252 = vmatpush1.bf16.xpose.msra.mxu0 0
        %1253 = vmatprep.subr.bf16.mxu0 0
        %1254 = vmatpush1.bf16.xpose.msra.mxu0 0
        %1255 = vmatprep.subr.bf16.mxu0 0
        %1256 = vmatpush1.bf16.xpose.msra.mxu0 0
        %1257 = vmatprep.subr.bf16.mxu0 0
        %1258 = vmatpush1.bf16.xpose.msra.mxu0 0
        %1259 = vmatprep.subr.bf16.mxu0 0
        %1260 = vmatpush1.bf16.xpose.msra.mxu0 0
        %1261 = vmatprep.subr.bf16.mxu0 0
        %1262 = vmatpush1.bf16.xpose.msra.mxu0 0
        %1263 = vmatprep.subr.bf16.mxu0 0
        %1264 = vmatpush1.bf16.xpose.msra.mxu0 0
        %1265 = vmatprep.subr.bf16.mxu0 0
        %1266 = vmatpush1.bf16.xpose.msra.mxu0 0
        %1267 = vmatprep.subr.bf16.mxu0 0
        %1268 = vmatpush1.bf16.xpose.msra.mxu0 0
        %1269 = vmatprep.subr.bf16.mxu0 0
        %1270 = vmatpush1.bf16.xpose.msra.mxu0 0
        %1271 = vmatprep.mubr.bf16.mxu0 0
        %1272 = vmatmul.mubr.bf16.gmra.mrb[0].mxu0 %v1237
        %v1273 = vpop.f32.mrb[0].mxu0
        %v1274 = vadd.f32 0.0, %v1273
        %v1275 = vpop.f32.mrb[0].mxu0
        %v1276 = vpop.f32.mrb[0].mxu0
        %v1277 = vadd.f32 0.0, %v1276
        %v1278 = vpop.f32.mrb[0].mxu0
        %1279 = vdwg.mxu0
        %v1280 = vsel %vm867, %v1274, -1e+30
        %v1281 = vsel %vm868, %v1277, -1e+30
        %v1282 = vsel %vm922, %v1280, -inf
        %1283 = vmax.xlane.f32.xlu0 %v1282
        %v1284 = vpop.xlane.xlu0 %1283
        %v1285 = vsel %vm922, %v1281, -inf
        %1286 = vmax.xlane.f32.xlu0 %v1285
        %v1287 = vpop.xlane.xlu0 %1286
        %v1288 = vsub.f32 %v1280, %v1284
        %v1289 = vsub.f32 %v1281, %v1287
        %v1290 = vmul.f32 %v1288, 1.442695
        %v1291 = vpow.pop %v1290
        %v1292 = vmul.f32 %v1289, 1.442695
        %v1293 = vpow.pop %v1292
        %v1294 = vsel %vm922, %v1291, 0.0
        %1295 = vadd.xlane.f32.xlu0 %v1294
        %v1296 = vpop.xlane.xlu0 %1295
        %v1297 = vsel %vm922, %v1293, 0.0
        %1298 = vadd.xlane.f32.xlu0 %v1297
        %v1299 = vpop.xlane.xlu0 %1298
        %v1300 = vpack.c.bf16 %v1293, %v1291
        %v1302 = vsel %vm922, %v1300, 0
        %1304 = vmatprep.subr.bf16.mxu0 0
        %1305 = vmatpush1.bf16.msra.mxu0 %v1184
        %1306 = vmatprep.subr.bf16.mxu0 0
        %1307 = vmatpush1.bf16.msra.mxu0 0
        %1308 = vmatprep.subr.bf16.mxu0 0
        %1309 = vmatpush1.bf16.msra.mxu0 0
        %1310 = vmatprep.subr.bf16.mxu0 0
        %1311 = vmatpush1.bf16.msra.mxu0 0
        %1312 = vmatprep.subr.bf16.mxu0 0
        %1313 = vmatpush1.bf16.msra.mxu0 0
        %1314 = vmatprep.subr.bf16.mxu0 0
        %1315 = vmatpush1.bf16.msra.mxu0 0
        %1316 = vmatprep.subr.bf16.mxu0 0
        %1317 = vmatpush1.bf16.msra.mxu0 0
        %1318 = vmatprep.subr.bf16.mxu0 0
        %1319 = vmatpush1.bf16.msra.mxu0 0
        %1320 = vmatprep.subr.bf16.mxu0 0
        %1321 = vmatpush1.bf16.msra.mxu0 0
        %1322 = vmatprep.subr.bf16.mxu0 0
        %1323 = vmatpush1.bf16.msra.mxu0 0
        %1324 = vmatprep.subr.bf16.mxu0 0
        %1325 = vmatpush1.bf16.msra.mxu0 0
        %1326 = vmatprep.subr.bf16.mxu0 0
        %1327 = vmatpush1.bf16.msra.mxu0 0
        %1328 = vmatprep.subr.bf16.mxu0 0
        %1329 = vmatpush1.bf16.msra.mxu0 0
        %1330 = vmatprep.subr.bf16.mxu0 0
        %1331 = vmatpush1.bf16.msra.mxu0 0
        %1332 = vmatprep.subr.bf16.mxu0 0
        %1333 = vmatpush1.bf16.msra.mxu0 0
        %1334 = vmatprep.subr.bf16.mxu0 0
        %1335 = vmatpush1.bf16.msra.mxu0 0
        %1336 = vmatprep.mubr.bf16.mxu0 0
        %1337 = vmatmul.mubr.bf16.gmra.mrb[0].mxu0 %v1302
        %v1338 = vpop.f32.mrb[0].mxu0
        %v1339 = vadd.f32 0.0, %v1338
        %v1340 = vpop.f32.mrb[0].mxu0
        %v1341 = vpop.f32.mrb[0].mxu0
        %v1342 = vadd.f32 0.0, %v1341
        %v1343 = vpop.f32.mrb[0].mxu0
        %1344 = vdwg.mxu0
        %v1345 = vrcp.pop %v1296
        %v1346 = vrcp.pop %v1299
        %v1347 = vmul.f32 %v1339, %v1345
        %v1348 = vmul.f32 %v1342, %v1346
        %1351 = vrot.lane.b32.xlu0 %v1108, 32
        %v1352 = vpop.permute.xlu0 %1351
        %1353 = vrot.lane.b32.xlu0 %v1109, 32
        %v1354 = vpop.permute.xlu0 %1353
        %1359 = vrot.lane.b32.xlu0 %v1232, 64
        %v1360 = vpop.permute.xlu0 %1359
        %1361 = vrot.lane.b32.xlu0 %v1233, 64
        %v1362 = vpop.permute.xlu0 %1361
        %1367 = vrot.lane.b32.xlu0 %v1347, 96
        %v1368 = vpop.permute.xlu0 %1367
        %1369 = vrot.lane.b32.xlu0 %v1348, 96
        %v1370 = vpop.permute.xlu0 %1369
        %v1373 = vsel %vm872, %v992, %v1352
        %v1374 = vsel %vm872, %v993, %v1354
        %vm1375 = vcmask 523264
        %v1376 = vsel %vm1375, %v1373, %v1360
        %v1377 = vsel %vm1375, %v1374, %v1362
        %vm1378 = vcmask 785408
        %v1379 = vsel %vm1378, %v1376, %v1368
        %v1380 = vsel %vm1378, %v1377, %v1370
        %v1381 = vpack.c.bf16 %v1380, %v1379
        %v1382 = vld [vmem:[%s509] sm:$0xf]
        %v1383 = vld [vmem:[%s509 + $0x4] sm:$0xf]
        %v1384 = vld [vmem:[%s509 + $0x8] sm:$0xf]
        %v1385 = vld [vmem:[%s509 + $0xc] sm:$0xf]
        %v1386 = vld [vmem:[%s509 + $0x10] sm:$0xf]
        %v1387 = vld [vmem:[%s509 + $0x14] sm:$0xf]
        %v1388 = vld [vmem:[%s509 + $0x18] sm:$0xf]
        %v1389 = vld [vmem:[%s509 + $0x1c] sm:$0xf]
        %v1390 = vld [vmem:[%s509 + $0x20] sm:$0xf]
        %v1391 = vld [vmem:[%s509 + $0x24] sm:$0xf]
        %v1392 = vld [vmem:[%s509 + $0x28] sm:$0xf]
        %v1393 = vld [vmem:[%s509 + $0x2c] sm:$0xf]
        %v1394 = vld [vmem:[%s509 + $0x30] sm:$0xf]
        %v1395 = vld [vmem:[%s509 + $0x34] sm:$0xf]
        %v1396 = vld [vmem:[%s509 + $0x38] sm:$0xf]
        %v1397 = vld [vmem:[%s509 + $0x3c] sm:$0xf]
        %v1414 = vunpack.c.l.b16 %v1382
        %v1415 = vunpack.c.l.b16 %v1383
        %v1416 = vunpack.c.l.b16 %v1384
        %v1417 = vunpack.c.l.b16 %v1385
        %v1418 = vunpack.c.l.b16 %v1386
        %v1419 = vunpack.c.l.b16 %v1387
        %v1420 = vunpack.c.l.b16 %v1388
        %v1421 = vunpack.c.l.b16 %v1389
        %v1422 = vunpack.c.l.b16 %v1390
        %v1423 = vunpack.c.l.b16 %v1391
        %v1424 = vunpack.c.l.b16 %v1392
        %v1425 = vunpack.c.l.b16 %v1393
        %v1426 = vunpack.c.l.b16 %v1394
        %v1427 = vunpack.c.l.b16 %v1395
        %v1428 = vunpack.c.l.b16 %v1396
        %v1429 = vunpack.c.l.b16 %v1397
        %v1430 = vpack.c.b16 %v1415, %v1414
        %v1431 = vpack.c.b16 %v1417, %v1416
        %v1432 = vpack.c.b16 %v1419, %v1418
        %v1433 = vpack.c.b16 %v1421, %v1420
        %v1434 = vpack.c.b16 %v1423, %v1422
        %v1435 = vpack.c.b16 %v1425, %v1424
        %v1436 = vpack.c.b16 %v1427, %v1426
        %v1437 = vpack.c.b16 %v1429, %v1428
        %1446 = vmatprep.subr.bf16.mxu0 0
        %1447 = vmatpush1.bf16.msra.mxu0 %v1430
        %1448 = vmatprep.subr.bf16.mxu0 0
        %1449 = vmatpush1.bf16.msra.mxu0 %v1431
        %1450 = vmatprep.subr.bf16.mxu0 0
        %1451 = vmatpush1.bf16.msra.mxu0 %v1432
        %1452 = vmatprep.subr.bf16.mxu0 0
        %1453 = vmatpush1.bf16.msra.mxu0 %v1433
        %1454 = vmatprep.subr.bf16.mxu0 0
        %1455 = vmatpush1.bf16.msra.mxu0 %v1434
        %1456 = vmatprep.subr.bf16.mxu0 0
        %1457 = vmatpush1.bf16.msra.mxu0 %v1435
        %1458 = vmatprep.subr.bf16.mxu0 0
        %1459 = vmatpush1.bf16.msra.mxu0 %v1436
        %1460 = vmatprep.subr.bf16.mxu0 0
        %1461 = vmatpush1.bf16.msra.mxu0 %v1437
        %1462 = vmatprep.subr.bf16.mxu0 0
        %1463 = vmatpush1.bf16.msra.mxu0 0
        %1464 = vmatprep.subr.bf16.mxu0 0
        %1465 = vmatpush1.bf16.msra.mxu0 0
        %1466 = vmatprep.subr.bf16.mxu0 0
        %1467 = vmatpush1.bf16.msra.mxu0 0
        %1468 = vmatprep.subr.bf16.mxu0 0
        %1469 = vmatpush1.bf16.msra.mxu0 0
        %1470 = vmatprep.subr.bf16.mxu0 0
        %1471 = vmatpush1.bf16.msra.mxu0 0
        %1472 = vmatprep.subr.bf16.mxu0 0
        %1473 = vmatpush1.bf16.msra.mxu0 0
        %1474 = vmatprep.subr.bf16.mxu0 0
        %1475 = vmatpush1.bf16.msra.mxu0 0
        %1476 = vmatprep.subr.bf16.mxu0 0
        %1477 = vmatpush1.bf16.msra.mxu0 0
        %1478 = vmatprep.mubr.bf16.mxu0 0
        %1479 = vmatmul.mubr.bf16.gmra.mrb[0].mxu0 %v1381
        %v1480 = vpop.f32.mrb[0].mxu0
        %v1481 = vadd.f32 0.0, %v1480
        %v1482 = vpop.f32.mrb[0].mxu0
        %v1483 = vpop.f32.mrb[0].mxu0
        %v1484 = vadd.f32 0.0, %v1483
        %v1485 = vpop.f32.mrb[0].mxu0
        %1486 = vdwg.mxu0
        %v1487 = vadd.f32 %v607, %v1481
        %v1488 = vadd.f32 %v608, %v1484
        %1489 = vst [vmem:[#allocation2] sm:$0xff] %v1487
        %1490 = vst [vmem:[#allocation2 + $0x8] sm:$0xff] %v1488
        %v1491 = vld [vmem:[#allocation2] sm:$0xff]
        %v1492 = vld [vmem:[#allocation2 + $0x8] sm:$0xff]
        %v1493 = vmul.f32 %v1491, %v1491
        %v1494 = vmul.f32 %v1492, %v1492
        %1495 = vadd.xlane.f32.xlu0 %v1493
        %v1496 = vpop.xlane.xlu0 %1495
        %1497 = vadd.xlane.f32.xlu0 %v1494
        %v1498 = vpop.xlane.xlu0 %1497
        %v1499 = vmul.f32 %v1496, %v615
        %v1500 = vmul.f32 %v1498, %v615
        %v1501 = vadd.f32 %v1499, 1e-05
        %v1502 = vadd.f32 %v1500, 1e-05
        %v1503 = vrsqrt.pop %v1501
        %v1504 = vrsqrt.pop %v1502
        %v1505 = vmul.f32 %v1491, %v1503
        %v1506 = vmul.f32 %v1492, %v1504
        %v1507 = vld [vmem:[%s595] sm:$0x1]
        %v1509 = vlaneseq
        %v1510 = vshrl.u32 %v1509, 7
        %v1511 = vsub.s32 0, %v1510
        %v1512 = vrot.slane %v1507, %v1511
        %v1514 = vmul.f32 %v1505, %v1512
        %v1515 = vmul.f32 %v1506, %v1512
        %v1516 = vpack.c.bf16 %v1515, %v1514
        %v1517 = vld [vmem:[%s518] sm:$0xff]
        %v1518 = vld [vmem:[%s518 + $0x8] sm:$0xff]
        %v1519 = vld [vmem:[%s518 + $0x10] sm:$0xff]
        %v1520 = vld [vmem:[%s518 + $0x18] sm:$0xff]
        %v1521 = vld [vmem:[%s518 + $0x20] sm:$0xff]
        %v1522 = vld [vmem:[%s518 + $0x28] sm:$0xff]
        %v1523 = vld [vmem:[%s518 + $0x30] sm:$0xff]
        %v1524 = vld [vmem:[%s518 + $0x38] sm:$0xff]
        %v1525 = vld [vmem:[%s518 + $0x40] sm:$0xff]
        %v1526 = vld [vmem:[%s518 + $0x48] sm:$0xff]
        %v1527 = vld [vmem:[%s518 + $0x50] sm:$0xff]
        %v1528 = vld [vmem:[%s518 + $0x58] sm:$0xff]
        %v1529 = vld [vmem:[%s518 + $0x60] sm:$0xff]
        %v1530 = vld [vmem:[%s518 + $0x68] sm:$0xff]
        %v1531 = vld [vmem:[%s518 + $0x70] sm:$0xff]
        %v1532 = vld [vmem:[%s518 + $0x78] sm:$0xff]
        %v1549 = vunpack.c.l.b16 %v1517
        %v1550 = vunpack.c.h.b16 %v1517
        %v1551 = vunpack.c.l.b16 %v1518
        %v1552 = vunpack.c.h.b16 %v1518
        %v1553 = vunpack.c.l.b16 %v1519
        %v1554 = vunpack.c.h.b16 %v1519
        %v1555 = vunpack.c.l.b16 %v1520
        %v1556 = vunpack.c.h.b16 %v1520
        %v1557 = vunpack.c.l.b16 %v1521
        %v1558 = vunpack.c.h.b16 %v1521
        %v1559 = vunpack.c.l.b16 %v1522
        %v1560 = vunpack.c.h.b16 %v1522
        %v1561 = vunpack.c.l.b16 %v1523
        %v1562 = vunpack.c.h.b16 %v1523
        %v1563 = vunpack.c.l.b16 %v1524
        %v1564 = vunpack.c.h.b16 %v1524
        %v1565 = vunpack.c.l.b16 %v1525
        %v1566 = vunpack.c.h.b16 %v1525
        %v1567 = vunpack.c.l.b16 %v1526
        %v1568 = vunpack.c.h.b16 %v1526
        %v1569 = vunpack.c.l.b16 %v1527
        %v1570 = vunpack.c.h.b16 %v1527
        %v1571 = vunpack.c.l.b16 %v1528
        %v1572 = vunpack.c.h.b16 %v1528
        %v1573 = vunpack.c.l.b16 %v1529
        %v1574 = vunpack.c.h.b16 %v1529
        %v1575 = vunpack.c.l.b16 %v1530
        %v1576 = vunpack.c.h.b16 %v1530
        %v1577 = vunpack.c.l.b16 %v1531
        %v1578 = vunpack.c.h.b16 %v1531
        %v1579 = vunpack.c.l.b16 %v1532
        %v1580 = vunpack.c.h.b16 %v1532
        %v1581 = vpack.c.b16 %v1551, %v1549
        %v1582 = vpack.c.b16 %v1552, %v1550
        %v1583 = vpack.c.b16 %v1555, %v1553
        %v1584 = vpack.c.b16 %v1556, %v1554
        %v1585 = vpack.c.b16 %v1559, %v1557
        %v1586 = vpack.c.b16 %v1560, %v1558
        %v1587 = vpack.c.b16 %v1563, %v1561
        %v1588 = vpack.c.b16 %v1564, %v1562
        %v1589 = vpack.c.b16 %v1567, %v1565
        %v1590 = vpack.c.b16 %v1568, %v1566
        %v1591 = vpack.c.b16 %v1571, %v1569
        %v1592 = vpack.c.b16 %v1572, %v1570
        %v1593 = vpack.c.b16 %v1575, %v1573
        %v1594 = vpack.c.b16 %v1576, %v1574
        %v1595 = vpack.c.b16 %v1579, %v1577
        %v1596 = vpack.c.b16 %v1580, %v1578
        %1613 = vmatprep.subr.bf16.mxu0 %v1582
        %1614 = vmatpush1.bf16.msra.mxu0 %v1581
        %1615 = vmatprep.subr.bf16.mxu0 %v1584
        %1616 = vmatpush1.bf16.msra.mxu0 %v1583
        %1617 = vmatprep.subr.bf16.mxu0 %v1586
        %1618 = vmatpush1.bf16.msra.mxu0 %v1585
        %1619 = vmatprep.subr.bf16.mxu0 %v1588
        %1620 = vmatpush1.bf16.msra.mxu0 %v1587
        %1621 = vmatprep.subr.bf16.mxu0 %v1590
        %1622 = vmatpush1.bf16.msra.mxu0 %v1589
        %1623 = vmatprep.subr.bf16.mxu0 %v1592
        %1624 = vmatpush1.bf16.msra.mxu0 %v1591
        %1625 = vmatprep.subr.bf16.mxu0 %v1594
        %1626 = vmatpush1.bf16.msra.mxu0 %v1593
        %1627 = vmatprep.subr.bf16.mxu0 %v1596
        %1628 = vmatpush1.bf16.msra.mxu0 %v1595
        %1629 = vmatprep.subr.bf16.mxu0 0
        %1630 = vmatpush1.bf16.msra.mxu0 0
        %1631 = vmatprep.subr.bf16.mxu0 0
        %1632 = vmatpush1.bf16.msra.mxu0 0
        %1633 = vmatprep.subr.bf16.mxu0 0
        %1634 = vmatpush1.bf16.msra.mxu0 0
        %1635 = vmatprep.subr.bf16.mxu0 0
        %1636 = vmatpush1.bf16.msra.mxu0 0
        %1637 = vmatprep.subr.bf16.mxu0 0
        %1638 = vmatpush1.bf16.msra.mxu0 0
        %1639 = vmatprep.subr.bf16.mxu0 0
        %1640 = vmatpush1.bf16.msra.mxu0 0
        %1641 = vmatprep.subr.bf16.mxu0 0
        %1642 = vmatpush1.bf16.msra.mxu0 0
        %1643 = vmatprep.subr.bf16.mxu0 0
        %1644 = vmatpush1.bf16.msra.mxu0 0
        %1645 = vmatprep.mubr.bf16.mxu0 0
        %1646 = vmatmul.mubr.bf16.gmra.mrb[0].mxu0 %v1516
        %v1647 = vpop.f32.mrb[0].mxu0
        %v1648 = vadd.f32 0.0, %v1647
        %v1649 = vpop.f32.mrb[0].mxu0
        %v1650 = vadd.f32 0.0, %v1649
        %v1651 = vpop.f32.mrb[0].mxu0
        %v1652 = vadd.f32 0.0, %v1651
        %v1653 = vpop.f32.mrb[0].mxu0
        %v1654 = vadd.f32 0.0, %v1653
        %1655 = vdwg.mxu0
        %v1656 = vxor.u32 %v1648, 2147483648
        %v1657 = vxor.u32 %v1652, 2147483648
        %v1658 = vmul.f32 %v1656, 1.442695
        %v1659 = vpow.pop %v1658
        %v1660 = vmul.f32 %v1657, 1.442695
        %v1661 = vpow.pop %v1660
        %v1662 = vadd.f32 %v1659, 1.0
        %v1663 = vadd.f32 %v1661, 1.0
        %v1664 = vrcp.pop %v1662
        %v1665 = vmul.f32 1.0, %v1664
        %v1666 = vrcp.pop %v1663
        %v1667 = vmul.f32 1.0, %v1666
        %v1668 = vmul.f32 %v1648, %v1665
        %v1669 = vmul.f32 %v1652, %v1667
        %v1670 = vmul.f32 %v1668, %v1650
        %v1671 = vmul.f32 %v1669, %v1654
        %v1672 = vpack.c.bf16 %v1671, %v1670
        %v1673 = vld [vmem:[%s527] sm:$0xf]
        %v1674 = vld [vmem:[%s527 + $0x4] sm:$0xf]
        %v1675 = vld [vmem:[%s527 + $0x8] sm:$0xf]
        %v1676 = vld [vmem:[%s527 + $0xc] sm:$0xf]
        %v1677 = vld [vmem:[%s527 + $0x10] sm:$0xf]
        %v1678 = vld [vmem:[%s527 + $0x14] sm:$0xf]
        %v1679 = vld [vmem:[%s527 + $0x18] sm:$0xf]
        %v1680 = vld [vmem:[%s527 + $0x1c] sm:$0xf]
        %v1681 = vld [vmem:[%s527 + $0x20] sm:$0xf]
        %v1682 = vld [vmem:[%s527 + $0x24] sm:$0xf]
        %v1683 = vld [vmem:[%s527 + $0x28] sm:$0xf]
        %v1684 = vld [vmem:[%s527 + $0x2c] sm:$0xf]
        %v1685 = vld [vmem:[%s527 + $0x30] sm:$0xf]
        %v1686 = vld [vmem:[%s527 + $0x34] sm:$0xf]
        %v1687 = vld [vmem:[%s527 + $0x38] sm:$0xf]
        %v1688 = vld [vmem:[%s527 + $0x3c] sm:$0xf]
        %v1705 = vunpack.c.l.b16 %v1673
        %v1706 = vunpack.c.l.b16 %v1674
        %v1707 = vunpack.c.l.b16 %v1675
        %v1708 = vunpack.c.l.b16 %v1676
        %v1709 = vunpack.c.l.b16 %v1677
        %v1710 = vunpack.c.l.b16 %v1678
        %v1711 = vunpack.c.l.b16 %v1679
        %v1712 = vunpack.c.l.b16 %v1680
        %v1713 = vunpack.c.l.b16 %v1681
        %v1714 = vunpack.c.l.b16 %v1682
        %v1715 = vunpack.c.l.b16 %v1683
        %v1716 = vunpack.c.l.b16 %v1684
        %v1717 = vunpack.c.l.b16 %v1685
        %v1718 = vunpack.c.l.b16 %v1686
        %v1719 = vunpack.c.l.b16 %v1687
        %v1720 = vunpack.c.l.b16 %v1688
        %v1721 = vpack.c.b16 %v1706, %v1705
        %v1722 = vpack.c.b16 %v1708, %v1707
        %v1723 = vpack.c.b16 %v1710, %v1709
        %v1724 = vpack.c.b16 %v1712, %v1711
        %v1725 = vpack.c.b16 %v1714, %v1713
        %v1726 = vpack.c.b16 %v1716, %v1715
        %v1727 = vpack.c.b16 %v1718, %v1717
        %v1728 = vpack.c.b16 %v1720, %v1719
        %1737 = vmatprep.subr.bf16.mxu0 0
        %1738 = vmatpush1.bf16.msra.mxu0 %v1721
        %1739 = vmatprep.subr.bf16.mxu0 0
        %1740 = vmatpush1.bf16.msra.mxu0 %v1722
        %1741 = vmatprep.subr.bf16.mxu0 0
        %1742 = vmatpush1.bf16.msra.mxu0 %v1723
        %1743 = vmatprep.subr.bf16.mxu0 0
        %1744 = vmatpush1.bf16.msra.mxu0 %v1724
        %1745 = vmatprep.subr.bf16.mxu0 0
        %1746 = vmatpush1.bf16.msra.mxu0 %v1725
        %1747 = vmatprep.subr.bf16.mxu0 0
        %1748 = vmatpush1.bf16.msra.mxu0 %v1726
        %1749 = vmatprep.subr.bf16.mxu0 0
        %1750 = vmatpush1.bf16.msra.mxu0 %v1727
        %1751 = vmatprep.subr.bf16.mxu0 0
        %1752 = vmatpush1.bf16.msra.mxu0 %v1728
        %1753 = vmatprep.subr.bf16.mxu0 0
        %1754 = vmatpush1.bf16.msra.mxu0 0
        %1755 = vmatprep.subr.bf16.mxu0 0
        %1756 = vmatpush1.bf16.msra.mxu0 0
        %1757 = vmatprep.subr.bf16.mxu0 0
        %1758 = vmatpush1.bf16.msra.mxu0 0
        %1759 = vmatprep.subr.bf16.mxu0 0
        %1760 = vmatpush1.bf16.msra.mxu0 0
        %1761 = vmatprep.subr.bf16.mxu0 0
        %1762 = vmatpush1.bf16.msra.mxu0 0
        %1763 = vmatprep.subr.bf16.mxu0 0
        %1764 = vmatpush1.bf16.msra.mxu0 0
        %1765 = vmatprep.subr.bf16.mxu0 0
        %1766 = vmatpush1.bf16.msra.mxu0 0
        %1767 = vmatprep.subr.bf16.mxu0 0
        %1768 = vmatpush1.bf16.msra.mxu0 0
        %1769 = vmatprep.mubr.bf16.mxu0 0
        %1770 = vmatmul.mubr.bf16.gmra.mrb[0].mxu0 %v1672
        %v1771 = vpop.f32.mrb[0].mxu0
        %v1772 = vadd.f32 0.0, %v1771
        %v1773 = vpop.f32.mrb[0].mxu0
        %v1774 = vpop.f32.mrb[0].mxu0
        %v1775 = vadd.f32 0.0, %v1774
        %v1776 = vpop.f32.mrb[0].mxu0
        %1777 = vdwg.mxu0
        %v1778 = vadd.f32 %v1491, %v1772
        %v1779 = vadd.f32 %v1492, %v1775
        %1780 = vst [vmem:[#allocation2] sm:$0xff] %v1778
        %1781 = vst [vmem:[#allocation2 + $0x8] sm:$0xff] %v1779
        %p1782 = scmp.eq.s32.totalorder %s31, 1
        // Predicated region
        $region97: #{tpu_custom_call.1} parent=63 // pred_check
          %p1783 = pneg %p1782
        $region98: #{tpu_custom_call.1} parent=63 // pred_check_branch
          %1785 = sbr.rel (%p1783) target = $region100
        $region99: #{tpu_custom_call.1} parent=63 // pred_region
          %v1786 = vld [vmem:[#allocation2] sm:$0xff]
          %v1787 = vld [vmem:[#allocation2 + $0x8] sm:$0xff]
          %v1788 = vmul.f32 %v1786, %v1786
          %v1789 = vmul.f32 %v1787, %v1787
          %1790 = vadd.xlane.f32.xlu0 %v1788
          %v1791 = vpop.xlane.xlu0 %1790
          %1792 = vadd.xlane.f32.xlu0 %v1789
          %v1793 = vpop.xlane.xlu0 %1792
          %v1794 = vmul.f32 %v1791, %v615
          %v1795 = vmul.f32 %v1793, %v615
          %v1796 = vadd.f32 %v1794, 1e-05
          %v1797 = vadd.f32 %v1795, 1e-05
          %v1798 = vrsqrt.pop %v1796
          %v1799 = vrsqrt.pop %v1797
          %v1800 = vmul.f32 %v1786, %v1798
          %v1801 = vmul.f32 %v1787, %v1799
          %v1802 = vld [vmem:[%s3] sm:$0x1]
          %v1804 = vlaneseq
          %v1805 = vshrl.u32 %v1804, 7
          %v1806 = vsub.s32 0, %v1805
          %v1807 = vrot.slane %v1802, %v1806
          %v1809 = vmul.f32 %v1800, %v1807
          %v1810 = vmul.f32 %v1801, %v1807
          %v1811 = vpack.c.bf16 %v1810, %v1809
          %v1813 = vunpack.c.l.b16 %v1811
          %v1814 = vunpack.c.h.b16 %v1811
          %v1815 = vpack.c.b16 %v1813, %v1813
          %v1816 = vpack.c.b16 %v1814, %v1814
          %1819 = vst [vmem:[#allocation15] sm:$0xf] %v1815
          %1820 = vst [vmem:[#allocation15 + $0x4] sm:$0xf] %v1816
        $region100: #{tpu_custom_call.1} parent=63 // pred_fallthru
          _
        // Predicated region
        $region101: #{tpu_custom_call.1} parent=63 // pred_check
          %p1821 = pneg %p310
        $region102: #{tpu_custom_call.1} parent=63 // pred_check_branch
          %1823 = sbr.rel (%p1821) target = $region104
        $region103: #{tpu_custom_call.1} parent=63 // pred_region
          %s1825 = ssub.s32 128, 128
          %1826 = vsyncadd [#allocation5], %s1825
          %s1827 = sshll.u32 [#allocation15], 4
          %s1828 = int_to_ptr.vmem [resolvable:$true] %s1827
          %1833 = dma.vmem_to_hbm [thread:$0]  %s1828, 128, %s11, [#allocation5], 64, 64, 4
        $region104: #{tpu_custom_call.1} parent=63 // pred_fallthru
          _
        // Predicated region
        $region105: #{tpu_custom_call.1} parent=63 // pred_check
          %p1834 = pneg %p310
        $region106: #{tpu_custom_call.1} parent=63 // pred_check_branch
          %1836 = sbr.rel (%p1834) target = $region108
        $region107: #{tpu_custom_call.1} parent=63 // pred_region
          %1837 = dma.done [#allocation5], 128
        $region108: #{tpu_custom_call.1} parent=63 // pred_fallthru
          _
      $region64: #{tpu_custom_call.1} parent=5 // pred_fallthru
        _
      %p1838 = scmp.le.s32.totalorder 2, %s26
      // Predicated region
      $region109: #{tpu_custom_call.1} parent=5 // pred_check
        %p1839 = pneg %p1838
      $region110: #{tpu_custom_call.1} parent=5 // pred_check_branch
        %1841 = sbr.rel (%p1839) target = $region112
      $region111: #{tpu_custom_call.1} parent=5 // pred_region
        %s1842 = ssub.s32 %s26, 2
      $region112: #{tpu_custom_call.1} parent=5 // pred_fallthru
        _
    $region6: #{tpu_custom_call.1} parent=1 // loop_footer
      %s30 = sadd.s32 1, %s26
    $region7: #{tpu_custom_call.1} parent=1 // loop_footer_branch
      %25 = sbr.rel target = $region3
    $region8: #{tpu_custom_call.1} parent=1 // loop_exit
      _
    %1843 = vsyncpa [#allocation4], 1
    %s1844 = scalar_lea.sflag [#allocation4], 1
    %1845 = vsyncpa %s1844, 1
    %1846 = vsyncpa [#allocation7], 1
    %1847 = vsyncpa [#allocation10], 1
    %s1848 = scalar_lea.sflag [#allocation10], 1
    %1849 = vsyncpa %s1848, 1
    %1850 = vsyncpa [#allocation13], 1
    %s1851 = scalar_lea.sflag [#allocation13], 1
    %1852 = vsyncpa %s1851, 1
    %1853 = vsyncpa [#allocation5], 1
    %s1854 = scalar_lea.sflag [#allocation5], 1
    %1855 = vsyncpa %s1854, 1

</llo_original>
